<compile_context>
chip_gen: v5e
topology: v5e:2x2
jax: 0.10.0
libtpu: 0.0.40
codegen_flags: <defaults>
</compile_context>

<pallas_src>
import jax
import jax.numpy as jnp
from jax.experimental import pallas as pl
from jax.experimental.pallas import tpu as pltpu


LANE = 128


def _round_up(x, m):
    return (x + m - 1) // m * m


# ---------------------------------------------------------------------------
# Pallas kernels
# ---------------------------------------------------------------------------
def fpre_kernel(x_ref, w_ref, b_ref, o_ref):
    """1x1 conv over channels; spatial flattened onto the lane axis.

    x_ref : (1, C, M)  one batch element, M = H*W (128-multiple)
    w_ref : (C, C)     (out_ch, in_ch)
    b_ref : (C, 1)
    o_ref : (1, C, M)
    """
    y = jnp.dot(w_ref[...], x_ref[0], preferred_element_type=jnp.float32)
    o_ref[0] = (y + b_ref[...]).astype(o_ref.dtype)


def freq_kernel(re_ref, im_ref, w1_ref, b1_ref, w2_ref, b2_ref, o_ref):
    """Fully fused frequency-domain branch of FreBlock.

    re_ref, im_ref : (1, C, Mp)   real / imag planes of rfft2(fpre(x)),
                                  Mp = H*(W//2+1) zero-padded to a 128-multiple
    w1_ref, w2_ref : (2C, 2C)     block-diag(process1_wk, process2_wk)
    b1_ref, b2_ref : (2C, 1)      matching stacked biases
    o_ref          : (1, 2C, Mp)  [real'; imag'] stacked on the sublane axis
    """
    re = re_ref[0]
    im = im_ref[0]
    C = re.shape[0]

    # complex -> (magnitude, phase) inside the kernel (no HBM round trip).
    # arctan2(0, 0) == 0, matching torch.angle on the zero-padded columns.
    mag = jnp.sqrt(re * re + im * im)
    pha = jnp.arctan2(im, re)

    # process1(mag) and process2(pha) fused as block-diagonal matmuls over the
    # combined (2C, Mp) operand: conv1x1 -> LeakyReLU(0.1) -> conv1x1.
    t = jnp.concatenate([mag, pha], axis=0)
    t = jnp.dot(w1_ref[...], t, preferred_element_type=jnp.float32) + b1_ref[...]
    t = jnp.where(t >= 0, t, 0.1 * t)
    t = jnp.dot(w2_ref[...], t, preferred_element_type=jnp.float32) + b2_ref[...]

    m2 = t[:C]       # processed magnitude
    p2 = t[C:]       # processed phase
    o_ref[0] = jnp.concatenate(
        [m2 * jnp.cos(p2), m2 * jnp.sin(p2)], axis=0).astype(o_ref.dtype)


# ---------------------------------------------------------------------------
# Wrappers (pallas_call plumbing)
# ---------------------------------------------------------------------------
def fpre_conv1x1(x_ncm, w, b):
    """x: (N, C, M), w: (C, C), b: (C,) -> (N, C, M)."""
    N, C, M = x_ncm.shape
    Mp = _round_up(M, LANE)
    if Mp != M:
        x_ncm = jnp.pad(x_ncm, ((0, 0), (0, 0), (0, Mp - M)))
    cost = pl.CostEstimate(
        flops=2 * N * C * C * Mp,
        transcendentals=0,
        bytes_accessed=4 * (2 * N * C * Mp + C * C + C),
    )
    out = pl.pallas_call(
        fpre_kernel,
        out_shape=jax.ShapeDtypeStruct((N, C, Mp), x_ncm.dtype),
        grid=(N,),
        in_specs=[
            pl.BlockSpec((1, C, Mp), lambda n: (n, 0, 0)),
            pl.BlockSpec((C, C), lambda n: (0, 0)),
            pl.BlockSpec((C, 1), lambda n: (0, 0)),
        ],
        out_specs=pl.BlockSpec((1, C, Mp), lambda n: (n, 0, 0)),
        compiler_params=pltpu.CompilerParams(dimension_semantics=("parallel",)),
        cost_estimate=cost,
    )(x_ncm, w, b.reshape(C, 1))
    return out[:, :, :M] if Mp != M else out


def freq_process(re, im, w1, b1, w2, b2):
    """re/im: (N, C, Mp) with Mp % 128 == 0 -> (N, 2C, Mp) stacked [re'; im']."""
    N, C, Mp = re.shape
    C2 = 2 * C
    cost = pl.CostEstimate(
        flops=2 * N * 2 * C2 * C2 * Mp,             # two (2C,2C)@(2C,Mp) matmuls
        transcendentals=4 * N * C * Mp,             # sqrt, atan2, cos, sin
        bytes_accessed=4 * (4 * N * C * Mp + 2 * C2 * C2 + 2 * C2),
    )
    return pl.pallas_call(
        freq_kernel,
        out_shape=jax.ShapeDtypeStruct((N, C2, Mp), re.dtype),
        grid=(N,),
        in_specs=[
            pl.BlockSpec((1, C, Mp), lambda n: (n, 0, 0)),
            pl.BlockSpec((1, C, Mp), lambda n: (n, 0, 0)),
            pl.BlockSpec((C2, C2), lambda n: (0, 0)),
            pl.BlockSpec((C2, 1), lambda n: (0, 0)),
            pl.BlockSpec((C2, C2), lambda n: (0, 0)),
            pl.BlockSpec((C2, 1), lambda n: (0, 0)),
        ],
        out_specs=pl.BlockSpec((1, C2, Mp), lambda n: (n, 0, 0)),
        compiler_params=pltpu.CompilerParams(dimension_semantics=("parallel",)),
        cost_estimate=cost,
    )(re, im, w1, b1, w2, b2)


# ---------------------------------------------------------------------------
# FreBlock forward
# ---------------------------------------------------------------------------
@jax.jit
def freblock_forward(x, params):
    """FreBlock forward.  x: (N, C, H, W) float32 -> (N, C, H, W) float32."""
    N, C, H, W = x.shape
    Wf = W // 2 + 1
    Mf = H * Wf
    Mp = _round_up(Mf, LANE)

    # 1) fpre 1x1 conv (Pallas, lane-dense over flattened spatial).
    y = fpre_conv1x1(x.reshape(N, C, H * W), params["fpre_w"], params["fpre_b"])
    y = y.reshape(N, C, H, W)

    # 2) forward real FFT (XLA custom call); real/imag planes, lane-padded.
    xf = jnp.fft.rfft2(y, norm="backward")                 # (N, C, H, Wf) c64
    pad = ((0, 0), (0, 0), (0, Mp - Mf))
    re = jnp.pad(jnp.real(xf).reshape(N, C, Mf), pad)
    im = jnp.pad(jnp.imag(xf).reshape(N, C, Mf), pad)

    # 3) fully fused frequency-domain processing (one Pallas kernel:
    #    abs/angle + both conv chains + LeakyReLU + cos/sin recombination).
    out = freq_process(re, im, params["w1"], params["b1"],
                       params["w2"], params["b2"])
    spec = jax.lax.complex(out[:, :C, :Mf],
                           out[:, C:, :Mf]).reshape(N, C, H, Wf)

    # 4) inverse FFT + residual add (XLA glue).
    return jnp.fft.irfft2(spec, s=(H, W), norm="backward") + x


# ---------------------------------------------------------------------------
# Deterministic synthetic parameters (shapes match the PyTorch module)
# ---------------------------------------------------------------------------
def init_freblock_params(key, nc):
    def conv1x1_init(k, cin, cout):
        kw, kb = jax.random.split(k)
        bound = 1.0 / (cin ** 0.5)
        w = jax.random.uniform(kw, (cout, cin), jnp.float32, -bound, bound)
        b = jax.random.uniform(kb, (cout,), jnp.float32, -bound, bound)
        return w, b

    def blkdiag(a, b):
        z = jnp.zeros_like(a)
        return jnp.block([[a, z], [z, b]])

    keys = jax.random.split(key, 5)
    fpre_w, fpre_b = conv1x1_init(keys[0], nc, nc)
    p1_w1, p1_b1 = conv1x1_init(keys[1], nc, nc)
    p1_w2, p1_b2 = conv1x1_init(keys[2], nc, nc)
    p2_w1, p2_b1 = conv1x1_init(keys[3], nc, nc)
    p2_w2, p2_b2 = conv1x1_init(keys[4], nc, nc)
    return {
        "fpre_w": fpre_w,
        "fpre_b": fpre_b,
        # Block-diagonal fusion of the magnitude branch (process1, top-left)
        # and the phase branch (process2, bottom-right), built host-side once.
        "w1": blkdiag(p1_w1, p2_w1),                          # (2nc, 2nc)
        "b1": jnp.concatenate([p1_b1, p2_b1])[:, None],       # (2nc, 1)
        "w2": blkdiag(p1_w2, p2_w2),                          # (2nc, 2nc)
        "b2": jnp.concatenate([p1_b2, p2_b2])[:, None],       # (2nc, 1)
    }


# ---------------------------------------------------------------------------
# Pure-JAX reference (validation only)
# ---------------------------------------------------------------------------
def freblock_reference(x, params):
    N, C, H, W = x.shape

    def conv1x1(t, w, b):  # t: (N, C, H, W'), w: (Cout, Cin), b: (Cout,)
        return jnp.einsum("oc,nchw->nohw", w, t) + b[None, :, None, None]

    def lrelu(t):
        return jnp.where(t >= 0, t, 0.1 * t)

    w1, b1 = params["w1"], params["b1"][:, 0]
    w2, b2 = params["w2"], params["b2"][:, 0]

    y = conv1x1(x, params["fpre_w"], params["fpre_b"])
    xf = jnp.fft.rfft2(y, norm="backward")
    mag, pha = jnp.abs(xf), jnp.angle(xf)
    m = conv1x1(lrelu(conv1x1(mag, w1[:C, :C], b1[:C])), w2[:C, :C], b2[:C])
    p = conv1x1(lrelu(conv1x1(pha, w1[C:, C:], b1[C:])), w2[C:, C:], b2[C:])
    spec = jax.lax.complex(m * jnp.cos(p), m * jnp.sin(p))
    return jnp.fft.irfft2(spec, s=(H, W), norm="backward") + x


if __name__ == "__main__":
    N, C, H, W = 2, 8, 16, 16

    key = jax.random.PRNGKey(0)
    kx, kp = jax.random.split(key)
    x = jax.random.normal(kx, (N, C, H, W), jnp.float32)
    params = init_freblock_params(kp, C)

    out = jax.block_until_ready(freblock_forward(x, params))
    ref = freblock_reference(x, params)

    assert out.shape == (N, C, H, W)
    max_err = float(jnp.max(jnp.abs(out - ref)))
    assert jnp.allclose(out, ref, atol=2e-3, rtol=2e-3), \
        f"mismatch vs reference: {max_err}"

    print("KERNEL_OK")
</pallas_src>

<mosaic_0001>
module attributes {stable_mosaic.version = 11 : i64} {
  func.func @fpre_kernel(%arg0: i32, %arg1: memref<1x8x256xf32, #tpu.memory_space<vmem>>, %arg2: memref<8x8xf32, #tpu.memory_space<vmem>>, %arg3: memref<8x1xf32, #tpu.memory_space<vmem>>, %arg4: memref<1x8x256xf32, #tpu.memory_space<vmem>>) attributes {dimension_semantics = [#tpu.dimension_semantics<parallel>], iteration_bounds = array<i64: 2>, scalar_prefetch = 0 : i64, scratch_operands = 0 : i64, tpu.core_type = #tpu.core_type<tc>, window_params = [{transform_indices = @transform_0, window_bounds = array<i64: 1, 8, 256>}, {pipeline_mode = #tpu.pipeline_mode<synchronous>, transform_indices = @transform_1, window_bounds = array<i64: 8, 8>}, {pipeline_mode = #tpu.pipeline_mode<synchronous>, transform_indices = @transform_2, window_bounds = array<i64: 8, 1>}, {transform_indices = @transform_3, window_bounds = array<i64: 1, 8, 256>}]} {
    %c0 = arith.constant 0 : index
    %c0_0 = arith.constant 0 : index
    %0 = vector.load %arg2[%c0, %c0_0] : memref<8x8xf32, #tpu.memory_space<vmem>>, vector<8x8xf32>
    %c0_1 = arith.constant 0 : index
    %c0_2 = arith.constant 0 : index
    %c0_3 = arith.constant 0 : index
    %1 = vector.load %arg1[%c0_1, %c0_2, %c0_3] : memref<1x8x256xf32, #tpu.memory_space<vmem>>, vector<1x8x256xf32>
    %2 = vector.shape_cast %1 : vector<1x8x256xf32> to vector<8x256xf32>
    %cst = arith.constant dense<0.000000e+00> : vector<8x256xf32>
    %3 = tpu.matmul %0, %2, %cst {dimension_numbers = #tpu.dot_dimension_numbers<[1], [0], [0], [1], [0, 0, 1, 1], [], []>} : vector<8x8xf32>, vector<8x256xf32>, vector<8x256xf32> -> vector<8x256xf32>
    %c0_4 = arith.constant 0 : index
    %c0_5 = arith.constant 0 : index
    %4 = vector.load %arg3[%c0_4, %c0_5] : memref<8x1xf32, #tpu.memory_space<vmem>>, vector<8x1xf32>
    %5 = vector.broadcast %4 : vector<8x1xf32> to vector<8x256xf32>
    %6 = arith.addf %3, %5 : vector<8x256xf32>
    %c0_6 = arith.constant 0 : index
    %c0_7 = arith.constant 0 : index
    %c0_8 = arith.constant 0 : index
    %7 = vector.load %arg4[%c0_6, %c0_7, %c0_8] : memref<1x8x256xf32, #tpu.memory_space<vmem>>, vector<1x8x256xf32>
    %8 = vector.shape_cast %7 : vector<1x8x256xf32> to vector<8x256xf32>
    %9 = vector.shape_cast %6 : vector<8x256xf32> to vector<1x8x256xf32>
    tpu.vector_store %arg4[%c0_6, %c0_7, %c0_8], %9 {strides = array<i32>} : memref<1x8x256xf32, #tpu.memory_space<vmem>>, vector<1x8x256xf32>,
    return
  }
  func.func @transform_0(%arg0: i32) -> (i32, i32, i32) {
    %c0_i32 = arith.constant 0 : i32
    %c0_i32_0 = arith.constant 0 : i32
    %c0_i32_1 = arith.constant 0 : i32
    return %arg0, %c0_i32, %c0_i32_0 : i32, i32, i32
  }
  func.func @transform_1(%arg0: i32) -> (i32, i32) {
    %c0_i32 = arith.constant 0 : i32
    %c0_i32_0 = arith.constant 0 : i32
    %c0_i32_1 = arith.constant 0 : i32
    return %c0_i32, %c0_i32_0 : i32, i32
  }
  func.func @transform_2(%arg0: i32) -> (i32, i32) {
    %c0_i32 = arith.constant 0 : i32
    %c0_i32_0 = arith.constant 0 : i32
    %c0_i32_1 = arith.constant 0 : i32
    return %c0_i32, %c0_i32_0 : i32, i32
  }
  func.func @transform_3(%arg0: i32) -> (i32, i32, i32) {
    %c0_i32 = arith.constant 0 : i32
    %c0_i32_0 = arith.constant 0 : i32
    %c0_i32_1 = arith.constant 0 : i32
    return %arg0, %c0_i32, %c0_i32_0 : i32, i32, i32
  }
}

module attributes {stable_mosaic.version = 11 : i64} {
  func.func @freq_kernel(%arg0: i32, %arg1: memref<1x8x256xf32, #tpu.memory_space<vmem>>, %arg2: memref<1x8x256xf32, #tpu.memory_space<vmem>>, %arg3: memref<16x16xf32, #tpu.memory_space<vmem>>, %arg4: memref<16x1xf32, #tpu.memory_space<vmem>>, %arg5: memref<16x16xf32, #tpu.memory_space<vmem>>, %arg6: memref<16x1xf32, #tpu.memory_space<vmem>>, %arg7: memref<1x16x256xf32, #tpu.memory_space<vmem>>) attributes {dimension_semantics = [#tpu.dimension_semantics<parallel>], iteration_bounds = array<i64: 2>, scalar_prefetch = 0 : i64, scratch_operands = 0 : i64, tpu.core_type = #tpu.core_type<tc>, window_params = [{transform_indices = @transform_0, window_bounds = array<i64: 1, 8, 256>}, {transform_indices = @transform_1, window_bounds = array<i64: 1, 8, 256>}, {pipeline_mode = #tpu.pipeline_mode<synchronous>, transform_indices = @transform_2, window_bounds = array<i64: 16, 16>}, {pipeline_mode = #tpu.pipeline_mode<synchronous>, transform_indices = @transform_3, window_bounds = array<i64: 16, 1>}, {pipeline_mode = #tpu.pipeline_mode<synchronous>, transform_indices = @transform_4, window_bounds = array<i64: 16, 16>}, {pipeline_mode = #tpu.pipeline_mode<synchronous>, transform_indices = @transform_5, window_bounds = array<i64: 16, 1>}, {transform_indices = @transform_6, window_bounds = array<i64: 1, 16, 256>}]} {
    %c0 = arith.constant 0 : index
    %c0_0 = arith.constant 0 : index
    %c0_1 = arith.constant 0 : index
    %0 = vector.load %arg1[%c0, %c0_0, %c0_1] : memref<1x8x256xf32, #tpu.memory_space<vmem>>, vector<1x8x256xf32>
    %1 = vector.shape_cast %0 : vector<1x8x256xf32> to vector<8x256xf32>
    %c0_2 = arith.constant 0 : index
    %c0_3 = arith.constant 0 : index
    %c0_4 = arith.constant 0 : index
    %2 = vector.load %arg2[%c0_2, %c0_3, %c0_4] : memref<1x8x256xf32, #tpu.memory_space<vmem>>, vector<1x8x256xf32>
    %3 = vector.shape_cast %2 : vector<1x8x256xf32> to vector<8x256xf32>
    %4 = arith.mulf %1, %1 : vector<8x256xf32>
    %5 = arith.mulf %3, %3 : vector<8x256xf32>
    %6 = arith.addf %4, %5 : vector<8x256xf32>
    %7 = math.sqrt %6 : vector<8x256xf32>
    %8 = math.atan2 %3, %1 : vector<8x256xf32>
    %9 = tpu.concatenate %7, %8 in 0 : vector<8x256xf32>, vector<8x256xf32> -> vector<16x256xf32>
    %c0_5 = arith.constant 0 : index
    %c0_6 = arith.constant 0 : index
    %10 = vector.load %arg3[%c0_5, %c0_6] : memref<16x16xf32, #tpu.memory_space<vmem>>, vector<16x16xf32>
    %cst = arith.constant dense<0.000000e+00> : vector<16x256xf32>
    %11 = tpu.matmul %10, %9, %cst {dimension_numbers = #tpu.dot_dimension_numbers<[1], [0], [0], [1], [0, 0, 1, 1], [], []>} : vector<16x16xf32>, vector<16x256xf32>, vector<16x256xf32> -> vector<16x256xf32>
    %c0_7 = arith.constant 0 : index
    %c0_8 = arith.constant 0 : index
    %12 = vector.load %arg4[%c0_7, %c0_8] : memref<16x1xf32, #tpu.memory_space<vmem>>, vector<16x1xf32>
    %13 = vector.broadcast %12 : vector<16x1xf32> to vector<16x256xf32>
    %14 = arith.addf %11, %13 : vector<16x256xf32>
    %cst_9 = arith.constant 0.000000e+00 : f32
    %15 = vector.broadcast %cst_9 : f32 to vector<16x256xf32>
    %16 = arith.cmpf oge, %14, %15 : vector<16x256xf32>
    %cst_10 = arith.constant 1.000000e-01 : f32
    %17 = vector.broadcast %cst_10 : f32 to vector<16x256xf32>
    %18 = arith.mulf %17, %14 : vector<16x256xf32>
    %19 = arith.select %16, %14, %18 : vector<16x256xi1>, vector<16x256xf32>
    %c0_11 = arith.constant 0 : index
    %c0_12 = arith.constant 0 : index
    %20 = vector.load %arg5[%c0_11, %c0_12] : memref<16x16xf32, #tpu.memory_space<vmem>>, vector<16x16xf32>
    %cst_13 = arith.constant dense<0.000000e+00> : vector<16x256xf32>
    %21 = tpu.matmul %20, %19, %cst_13 {dimension_numbers = #tpu.dot_dimension_numbers<[1], [0], [0], [1], [0, 0, 1, 1], [], []>} : vector<16x16xf32>, vector<16x256xf32>, vector<16x256xf32> -> vector<16x256xf32>
    %c0_14 = arith.constant 0 : index
    %c0_15 = arith.constant 0 : index
    %22 = vector.load %arg6[%c0_14, %c0_15] : memref<16x1xf32, #tpu.memory_space<vmem>>, vector<16x1xf32>
    %23 = vector.broadcast %22 : vector<16x1xf32> to vector<16x256xf32>
    %24 = arith.addf %21, %23 : vector<16x256xf32>
    %25 = vector.extract_strided_slice %24 {offsets = [0, 0], sizes = [8, 256], strides = [1, 1]} : vector<16x256xf32> to vector<8x256xf32>
    %26 = vector.extract_strided_slice %24 {offsets = [8, 0], sizes = [8, 256], strides = [1, 1]} : vector<16x256xf32> to vector<8x256xf32>
    %27 = math.cos %26 : vector<8x256xf32>
    %28 = arith.mulf %25, %27 : vector<8x256xf32>
    %29 = math.sin %26 : vector<8x256xf32>
    %30 = arith.mulf %25, %29 : vector<8x256xf32>
    %31 = tpu.concatenate %28, %30 in 0 : vector<8x256xf32>, vector<8x256xf32> -> vector<16x256xf32>
    %c0_16 = arith.constant 0 : index
    %c0_17 = arith.constant 0 : index
    %c0_18 = arith.constant 0 : index
    %32 = vector.load %arg7[%c0_16, %c0_17, %c0_18] : memref<1x16x256xf32, #tpu.memory_space<vmem>>, vector<1x16x256xf32>
    %33 = vector.shape_cast %32 : vector<1x16x256xf32> to vector<16x256xf32>
    %34 = vector.shape_cast %31 : vector<16x256xf32> to vector<1x16x256xf32>
    tpu.vector_store %arg7[%c0_16, %c0_17, %c0_18], %34 {strides = array<i32>} : memref<1x16x256xf32, #tpu.memory_space<vmem>>, vector<1x16x256xf32>,
    return
  }
  func.func @transform_0(%arg0: i32) -> (i32, i32, i32) {
    %c0_i32 = arith.constant 0 : i32
    %c0_i32_0 = arith.constant 0 : i32
    %c0_i32_1 = arith.constant 0 : i32
    return %arg0, %c0_i32, %c0_i32_0 : i32, i32, i32
  }
  func.func @transform_1(%arg0: i32) -> (i32, i32, i32) {
    %c0_i32 = arith.constant 0 : i32
    %c0_i32_0 = arith.constant 0 : i32
    %c0_i32_1 = arith.constant 0 : i32
    return %arg0, %c0_i32, %c0_i32_0 : i32, i32, i32
  }
  func.func @transform_2(%arg0: i32) -> (i32, i32) {
    %c0_i32 = arith.constant 0 : i32
    %c0_i32_0 = arith.constant 0 : i32
    %c0_i32_1 = arith.constant 0 : i32
    return %c0_i32, %c0_i32_0 : i32, i32
  }
  func.func @transform_3(%arg0: i32) -> (i32, i32) {
    %c0_i32 = arith.constant 0 : i32
    %c0_i32_0 = arith.constant 0 : i32
    %c0_i32_1 = arith.constant 0 : i32
    return %c0_i32, %c0_i32_0 : i32, i32
  }
  func.func @transform_4(%arg0: i32) -> (i32, i32) {
    %c0_i32 = arith.constant 0 : i32
    %c0_i32_0 = arith.constant 0 : i32
    %c0_i32_1 = arith.constant 0 : i32
    return %c0_i32, %c0_i32_0 : i32, i32
  }
  func.func @transform_5(%arg0: i32) -> (i32, i32) {
    %c0_i32 = arith.constant 0 : i32
    %c0_i32_0 = arith.constant 0 : i32
    %c0_i32_1 = arith.constant 0 : i32
    return %c0_i32, %c0_i32_0 : i32, i32
  }
  func.func @transform_6(%arg0: i32) -> (i32, i32, i32) {
    %c0_i32 = arith.constant 0 : i32
    %c0_i32_0 = arith.constant 0 : i32
    %c0_i32_1 = arith.constant 0 : i32
    return %arg0, %c0_i32, %c0_i32_0 : i32, i32, i32
  }
}

</mosaic_0001>

<llo_original>
// kernel: freblock_forward.2
$region0: #{freblock_forward.2}
  #allocation0 [shape = 'u32[]', space=smem, size = 0x4, offset = 0x4, fixed_abs, tag = 'smem constant byte address 0x4 - core index']
  #allocation1 [shape = 'u32[72,128]{1,0:T(1,128)}', space=vmem, size = 0x9000, scoped, tag = 'internal scratch']
  %s0 = inlined_call_operand.vmem [shape: f32[2,8,256], index: 0, kind: input, shape index: {}]
  %s1 = inlined_call_operand.vmem [shape: f32[8,8], index: 1, kind: input, shape index: {}]
  %s2 = inlined_call_operand.vmem [shape: f32[8,1], index: 2, kind: input, shape index: {}]
  %s3 = inlined_call_operand.vmem [shape: f32[2,8,256], index: 3, kind: output, shape index: {}]
  %s4 = sld [smem:[#allocation0]]
  $region45: #{freblock_forward.2} parent=0
    _
  %s6 = ssub.s32 1, %s4
  %s7 = scalar_select 0, %s6, %s4
  loop: start=0, step=1, limit=4
  $region2: #{freblock_forward.2} parent=0 // loop_pre_header
    _
  $region3: #{freblock_forward.2} parent=0 // loop_header
    %s9 = sphi 0, %s13
    %p10 = scmp.ge.s32.totalorder %s9, 4
    %s19 = sphi 0, %s21
    %s22 = sphi 0, %s19
    %s23 = sphi 0, %s22
    %s39 = sphi 0, %s23
    %s43 = sphi 0, %s43
    %s45 = sphi 0, %s43
    %s46 = sphi 0, %s45
    %s60 = sphi 0, %s46
    %s64 = sphi 0, %s64
    %s66 = sphi 0, %s64
    %s67 = sphi 0, %s66
    %s81 = sphi 0, %s67
    %s87 = sphi 0, %s89
    %s90 = sphi 0, %s87
    %s91 = sphi 0, %s90
    %s107 = sphi 0, %s91
  $region4: #{freblock_forward.2} parent=0 // loop_header_branch
    %12 = sbr.rel (%p10) target = $region8
  $region5: #{freblock_forward.2} parent=0 // loop_body
    %s14 = ssub.s32 %s9, 1
    %s15 = ssub.s32 %s9, 2
    %s16 = sadd.s32 %s9, 1
    %s17 = ssub.s32 %s9, %s16
    %p18 = scmp.eq.s32.totalorder %s17, 0
    %s20 = sadd.s32 %s19, 1
    %s21 = scalar_select %p18, %s19, %s20
    %p24 = pneg %p18
    %p25 = scmp.eq.s32.totalorder %s9, 1
    %p26 = por %p24, %p25
    %p27 = scmp.ne.s32.totalorder %s19, %s22
    %p28 = scmp.eq.s32.totalorder %s9, 0
    %p29 = por %p27, %p28
    %p30 = scmp.ne.s32.totalorder %s19, %s22
    %p31 = scmp.eq.s32.totalorder %s14, 1
    %p32 = por %p30, %p31
    %p33 = scmp.ne.s32.totalorder %s22, %s23
    %p34 = scmp.eq.s32.totalorder %s14, 0
    %p35 = por %p33, %p34
    %p36 = scmp.ne.s32.totalorder %s22, %s23
    %p37 = scmp.eq.s32.totalorder %s15, 1
    %p38 = por %p36, %p37
    %p40 = scmp.ne.s32.totalorder %s23, %s39
    %p41 = scmp.eq.s32.totalorder %s15, 0
    %p42 = por %p40, %p41
    %s44 = sadd.s32 %s43, 1
    %p47 = scmp.eq.s32.totalorder %s9, 1
    %p48 = scmp.ne.s32.totalorder %s43, %s45
    %p49 = scmp.eq.s32.totalorder %s9, 0
    %p50 = por %p48, %p49
    %p51 = scmp.ne.s32.totalorder %s43, %s45
    %p52 = scmp.eq.s32.totalorder %s14, 1
    %p53 = por %p51, %p52
    %p54 = scmp.ne.s32.totalorder %s45, %s46
    %p55 = scmp.eq.s32.totalorder %s14, 0
    %p56 = por %p54, %p55
    %p57 = scmp.ne.s32.totalorder %s45, %s46
    %p58 = scmp.eq.s32.totalorder %s15, 1
    %p59 = por %p57, %p58
    %p61 = scmp.ne.s32.totalorder %s46, %s60
    %p62 = scmp.eq.s32.totalorder %s15, 0
    %p63 = por %p61, %p62
    %s65 = sadd.s32 %s64, 1
    %p68 = scmp.eq.s32.totalorder %s9, 1
    %p69 = scmp.ne.s32.totalorder %s64, %s66
    %p70 = scmp.eq.s32.totalorder %s9, 0
    %p71 = por %p69, %p70
    %p72 = scmp.ne.s32.totalorder %s64, %s66
    %p73 = scmp.eq.s32.totalorder %s14, 1
    %p74 = por %p72, %p73
    %p75 = scmp.ne.s32.totalorder %s66, %s67
    %p76 = scmp.eq.s32.totalorder %s14, 0
    %p77 = por %p75, %p76
    %p78 = scmp.ne.s32.totalorder %s66, %s67
    %p79 = scmp.eq.s32.totalorder %s15, 1
    %p80 = por %p78, %p79
    %p82 = scmp.ne.s32.totalorder %s67, %s81
    %p83 = scmp.eq.s32.totalorder %s15, 0
    %p84 = por %p82, %p83
    %s85 = ssub.s32 %s9, %s16
    %p86 = scmp.eq.s32.totalorder %s85, 0
    %s88 = sadd.s32 %s87, 1
    %s89 = scalar_select %p86, %s87, %s88
    %p92 = pneg %p86
    %p93 = scmp.eq.s32.totalorder %s9, 1
    %p94 = por %p92, %p93
    %p95 = scmp.ne.s32.totalorder %s87, %s90
    %p96 = scmp.eq.s32.totalorder %s9, 0
    %p97 = por %p95, %p96
    %p98 = scmp.ne.s32.totalorder %s87, %s90
    %p99 = scmp.eq.s32.totalorder %s14, 1
    %p100 = por %p98, %p99
    %p101 = scmp.ne.s32.totalorder %s90, %s91
    %p102 = scmp.eq.s32.totalorder %s14, 0
    %p103 = por %p101, %p102
    %p104 = scmp.ne.s32.totalorder %s90, %s91
    %p105 = scmp.eq.s32.totalorder %s15, 1
    %p106 = por %p104, %p105
    %p108 = scmp.ne.s32.totalorder %s91, %s107
    %p109 = scmp.eq.s32.totalorder %s15, 0
    %p110 = por %p108, %p109
    %p111 = scmp.le.s32.totalorder 1, %s9
    %p112 = scmp.lt.s32.totalorder %s9, 3
    %p113 = pnand %p111, %p112
    %p114 = pneg %p113
    // Predicated region
    $region9: #{freblock_forward.2} parent=5 // pred_check
      _
    $region10: #{freblock_forward.2} parent=5 // pred_check_branch
      %116 = sbr.rel (%p113) target = $region12
    $region11: #{freblock_forward.2} parent=5 // pred_region
      %s117 = ssub.s32 %s9, 1
      // Predicated region
      $region13: #{freblock_forward.2} parent=11 // pred_check
        %p118 = pneg %p56
      $region14: #{freblock_forward.2} parent=11 // pred_check_branch
        %120 = sbr.rel (%p118) target = $region16
      $region15: #{freblock_forward.2} parent=11 // pred_region
        _
      $region16: #{freblock_forward.2} parent=11 // pred_fallthru
        _
      // Predicated region
      $region17: #{freblock_forward.2} parent=11 // pred_check
        %p121 = pneg %p77
      $region18: #{freblock_forward.2} parent=11 // pred_check_branch
        %123 = sbr.rel (%p121) target = $region20
      $region19: #{freblock_forward.2} parent=11 // pred_region
        _
      $region20: #{freblock_forward.2} parent=11 // pred_fallthru
        _
    $region12: #{freblock_forward.2} parent=5 // pred_fallthru
      _
    %p124 = scmp.lt.s32.totalorder %s9, 2
    // Predicated region
    $region21: #{freblock_forward.2} parent=5 // pred_check
      %p125 = pneg %p124
    $region22: #{freblock_forward.2} parent=5 // pred_check_branch
      %127 = sbr.rel (%p125) target = $region24
    $region23: #{freblock_forward.2} parent=5 // pred_region
      // Predicated region
      $region25: #{freblock_forward.2} parent=23 // pred_check
        %p128 = pneg %p29
      $region26: #{freblock_forward.2} parent=23 // pred_check_branch
        %130 = sbr.rel (%p128) target = $region28
      $region27: #{freblock_forward.2} parent=23 // pred_region
        %p131 = scmp.lt.s32.totalorder %s9, 1
        %s132 = scalar_select %p131, %s9, 1
        %s133 = smul.addr %s132, 2
        %s134 = smul.addr %s133, 8
        %s135 = scalar_lea.vmem %s0, %s134
      $region28: #{freblock_forward.2} parent=23 // pred_fallthru
        _
    $region24: #{freblock_forward.2} parent=5 // pred_fallthru
      _
    %p136 = scmp.le.s32.totalorder 1, %s9
    %p137 = scmp.lt.s32.totalorder %s9, 3
    %p138 = pnand %p136, %p137
    %p139 = pneg %p138
    // Predicated region
    $region29: #{freblock_forward.2} parent=5 // pred_check
      _
    $region30: #{freblock_forward.2} parent=5 // pred_check_branch
      %141 = sbr.rel (%p138) target = $region32
    $region31: #{freblock_forward.2} parent=5 // pred_region
      %s142 = ssub.s32 %s9, 1
      %p143 = scmp.lt.s32.totalorder %s14, 1
      %s144 = scalar_select %p143, %s14, 1
      %s145 = smul.addr %s144, 2
      %s146 = smul.addr %s145, 8
      %s147 = scalar_lea.vmem %s0, %s146
      %p148 = pneg %p35
      %p149 = pneg %p32
      %p150 = pneg %p56
      %p151 = pneg %p53
      %p152 = pneg %p77
      %p153 = pneg %p74
      %p154 = pneg %p103
      %p155 = pneg %p100
      %p156 = scmp.lt.s32.totalorder %s14, 1
      %s157 = scalar_select %p156, %s14, 1
      %s158 = smul.addr %s157, 2
      %s159 = smul.addr %s158, 8
      %s160 = scalar_lea.vmem %s3, %s159
      %p161 = scmp.lt.s32.totalorder %s14, 1
      %s162 = scalar_select %p161, %s14, 1
      %s163 = smul.addr %s162, 2
      %s164 = smul.addr %s163, 8
      %s165 = scalar_lea.vmem %s0, %s164
      %p166 = scmp.lt.s32.totalorder %s14, 1
      %s167 = scalar_select %p166, %s14, 1
      %s168 = smul.addr %s167, 2
      %s169 = smul.addr %s168, 8
      %s170 = scalar_lea.vmem %s3, %s169
      %v171 = vld [vmem:[%s1] sm:$0xff]
      %v172 = vld [vmem:[%s165] sm:$0xff]
      %v173 = vld [vmem:[%s165 + $0x8] sm:$0xff]
      %v174 = vld [vmem:[%s2] sm:$0xff]
      %176 = vset.pattern.permute.xlu0 0
      %177 = vperm.xlu0 %176, %v174
      %v178 = vpop.permute.xlu0 %177
      %vm180 = vcmask 64512
      %v182 = vsel %vm180, %v171, 0
      %184 = vmatpush.msra.mxu0 0.0
      %185 = vmatpush.msra.mxu0 0.0
      %186 = vmatpush.msra.mxu0 0.0
      %187 = vmatpush.msra.mxu0 0.0
      %188 = vmatpush.msra.mxu0 0.0
      %189 = vmatpush.msra.mxu0 0.0
      %190 = vmatpush.msra.mxu0 0.0
      %191 = vmatpush.msra.mxu0 0.0
      %192 = vmatpush.msra.mxu0 0.0
      %193 = vmatpush.msra.mxu0 0.0
      %194 = vmatpush.msra.mxu0 0.0
      %195 = vmatpush.msra.mxu0 0.0
      %196 = vmatpush.msra.mxu0 0.0
      %197 = vmatpush.msra.mxu0 0.0
      %198 = vmatpush.msra.mxu0 0.0
      %199 = vmatpush.msra.mxu0 %v172
      %200 = vmatmul.f32.gmra.mxu0 %v182
      %v201 = vpop.f32.mrf.mxu0
      %v202 = vadd.f32 %v178, %v201
      %203 = vdwg.mxu0
      %204 = vmatpush.msra.mxu0 0.0
      %205 = vmatpush.msra.mxu0 0.0
      %206 = vmatpush.msra.mxu0 0.0
      %207 = vmatpush.msra.mxu0 0.0
      %208 = vmatpush.msra.mxu0 0.0
      %209 = vmatpush.msra.mxu0 0.0
      %210 = vmatpush.msra.mxu0 0.0
      %211 = vmatpush.msra.mxu0 0.0
      %212 = vmatpush.msra.mxu0 0.0
      %213 = vmatpush.msra.mxu0 0.0
      %214 = vmatpush.msra.mxu0 0.0
      %215 = vmatpush.msra.mxu0 0.0
      %216 = vmatpush.msra.mxu0 0.0
      %217 = vmatpush.msra.mxu0 0.0
      %218 = vmatpush.msra.mxu0 0.0
      %219 = vmatpush.msra.mxu0 %v173
      %220 = vmatmul.f32.gmra.mxu0 %v182
      %v221 = vpop.f32.mrf.mxu0
      %v222 = vadd.f32 %v178, %v221
      %223 = vdwg.mxu0
      %224 = vst [vmem:[%s170] sm:$0xff] %v202
      %225 = vst [vmem:[%s170 + $0x8] sm:$0xff] %v222
      %p226 = scmp.lt.s32.totalorder %s14, 1
      %s227 = scalar_select %p226, %s14, 1
      %s228 = smul.addr %s227, 2
      %s229 = smul.addr %s228, 8
      %s230 = scalar_lea.vmem %s3, %s229
      // Predicated region
      $region33: #{freblock_forward.2} parent=31 // pred_check
        %p231 = pneg %p100
      $region34: #{freblock_forward.2} parent=31 // pred_check_branch
        %233 = sbr.rel (%p231) target = $region36
      $region35: #{freblock_forward.2} parent=31 // pred_region
        _
      $region36: #{freblock_forward.2} parent=31 // pred_fallthru
        _
    $region32: #{freblock_forward.2} parent=5 // pred_fallthru
      _
    %p234 = scmp.le.s32.totalorder 2, %s9
    // Predicated region
    $region37: #{freblock_forward.2} parent=5 // pred_check
      %p235 = pneg %p234
    $region38: #{freblock_forward.2} parent=5 // pred_check_branch
      %237 = sbr.rel (%p235) target = $region40
    $region39: #{freblock_forward.2} parent=5 // pred_region
      %s238 = ssub.s32 %s9, 2
      // Predicated region
      $region41: #{freblock_forward.2} parent=39 // pred_check
        %p239 = pneg %p106
      $region42: #{freblock_forward.2} parent=39 // pred_check_branch
        %241 = sbr.rel (%p239) target = $region44
      $region43: #{freblock_forward.2} parent=39 // pred_region
        %p242 = scmp.lt.s32.totalorder %s15, 1
        %s243 = scalar_select %p242, %s15, 1
        %s244 = smul.addr %s243, 2
        %s245 = smul.addr %s244, 8
        %s246 = scalar_lea.vmem %s3, %s245
      $region44: #{freblock_forward.2} parent=39 // pred_fallthru
        _
    $region40: #{freblock_forward.2} parent=5 // pred_fallthru
      _
  $region6: #{freblock_forward.2} parent=0 // loop_footer
    %s13 = sadd.s32 1, %s9
  $region7: #{freblock_forward.2} parent=0 // loop_footer_branch
    %8 = sbr.rel target = $region3
  $region8: #{freblock_forward.2} parent=0 // loop_exit
    _

// kernel: freblock_forward.3
$region0: #{freblock_forward.3}
  #allocation0 [shape = 'u32[]', space=smem, size = 0x4, offset = 0x4, fixed_abs, tag = 'smem constant byte address 0x4 - core index']
  #allocation1 [shape = 'u32[72,128]{1,0:T(1,128)}', space=vmem, size = 0x9000, scoped, tag = 'internal scratch']
  %s0 = inlined_call_operand.vmem [shape: f32[2,8,256], index: 0, kind: input, shape index: {}]
  %s1 = inlined_call_operand.vmem [shape: f32[2,8,256], index: 1, kind: input, shape index: {}]
  %s2 = inlined_call_operand.vmem [shape: f32[16,16], index: 2, kind: input, shape index: {}]
  %s3 = inlined_call_operand.vmem [shape: f32[16,1], index: 3, kind: input, shape index: {}]
  %s4 = inlined_call_operand.vmem [shape: f32[16,16], index: 4, kind: input, shape index: {}]
  %s5 = inlined_call_operand.vmem [shape: f32[16,1], index: 5, kind: input, shape index: {}]
  %s6 = inlined_call_operand.vmem [shape: f32[2,16,256], index: 6, kind: output, shape index: {}]
  %s7 = sld [smem:[#allocation0]]
  $region57: #{freblock_forward.3} parent=0
    _
  %s9 = ssub.s32 1, %s7
  %s10 = scalar_select 0, %s9, %s7
  loop: start=0, step=1, limit=4
  $region2: #{freblock_forward.3} parent=0 // loop_pre_header
    _
  $region3: #{freblock_forward.3} parent=0 // loop_header
    %s12 = sphi 0, %s16
    %p13 = scmp.ge.s32.totalorder %s12, 4
    %s22 = sphi 0, %s24
    %s25 = sphi 0, %s22
    %s26 = sphi 0, %s25
    %s42 = sphi 0, %s26
    %s48 = sphi 0, %s50
    %s51 = sphi 0, %s48
    %s52 = sphi 0, %s51
    %s68 = sphi 0, %s52
    %s72 = sphi 0, %s72
    %s74 = sphi 0, %s72
    %s75 = sphi 0, %s74
    %s89 = sphi 0, %s75
    %s93 = sphi 0, %s93
    %s95 = sphi 0, %s93
    %s96 = sphi 0, %s95
    %s110 = sphi 0, %s96
    %s114 = sphi 0, %s114
    %s116 = sphi 0, %s114
    %s117 = sphi 0, %s116
    %s131 = sphi 0, %s117
    %s135 = sphi 0, %s135
    %s137 = sphi 0, %s135
    %s138 = sphi 0, %s137
    %s152 = sphi 0, %s138
    %s158 = sphi 0, %s160
    %s161 = sphi 0, %s158
    %s162 = sphi 0, %s161
    %s178 = sphi 0, %s162
  $region4: #{freblock_forward.3} parent=0 // loop_header_branch
    %15 = sbr.rel (%p13) target = $region8
  $region5: #{freblock_forward.3} parent=0 // loop_body
    %s17 = ssub.s32 %s12, 1
    %s18 = ssub.s32 %s12, 2
    %s19 = sadd.s32 %s12, 1
    %s20 = ssub.s32 %s12, %s19
    %p21 = scmp.eq.s32.totalorder %s20, 0
    %s23 = sadd.s32 %s22, 1
    %s24 = scalar_select %p21, %s22, %s23
    %p27 = pneg %p21
    %p28 = scmp.eq.s32.totalorder %s12, 1
    %p29 = por %p27, %p28
    %p30 = scmp.ne.s32.totalorder %s22, %s25
    %p31 = scmp.eq.s32.totalorder %s12, 0
    %p32 = por %p30, %p31
    %p33 = scmp.ne.s32.totalorder %s22, %s25
    %p34 = scmp.eq.s32.totalorder %s17, 1
    %p35 = por %p33, %p34
    %p36 = scmp.ne.s32.totalorder %s25, %s26
    %p37 = scmp.eq.s32.totalorder %s17, 0
    %p38 = por %p36, %p37
    %p39 = scmp.ne.s32.totalorder %s25, %s26
    %p40 = scmp.eq.s32.totalorder %s18, 1
    %p41 = por %p39, %p40
    %p43 = scmp.ne.s32.totalorder %s26, %s42
    %p44 = scmp.eq.s32.totalorder %s18, 0
    %p45 = por %p43, %p44
    %s46 = ssub.s32 %s12, %s19
    %p47 = scmp.eq.s32.totalorder %s46, 0
    %s49 = sadd.s32 %s48, 1
    %s50 = scalar_select %p47, %s48, %s49
    %p53 = pneg %p47
    %p54 = scmp.eq.s32.totalorder %s12, 1
    %p55 = por %p53, %p54
    %p56 = scmp.ne.s32.totalorder %s48, %s51
    %p57 = scmp.eq.s32.totalorder %s12, 0
    %p58 = por %p56, %p57
    %p59 = scmp.ne.s32.totalorder %s48, %s51
    %p60 = scmp.eq.s32.totalorder %s17, 1
    %p61 = por %p59, %p60
    %p62 = scmp.ne.s32.totalorder %s51, %s52
    %p63 = scmp.eq.s32.totalorder %s17, 0
    %p64 = por %p62, %p63
    %p65 = scmp.ne.s32.totalorder %s51, %s52
    %p66 = scmp.eq.s32.totalorder %s18, 1
    %p67 = por %p65, %p66
    %p69 = scmp.ne.s32.totalorder %s52, %s68
    %p70 = scmp.eq.s32.totalorder %s18, 0
    %p71 = por %p69, %p70
    %s73 = sadd.s32 %s72, 1
    %p76 = scmp.eq.s32.totalorder %s12, 1
    %p77 = scmp.ne.s32.totalorder %s72, %s74
    %p78 = scmp.eq.s32.totalorder %s12, 0
    %p79 = por %p77, %p78
    %p80 = scmp.ne.s32.totalorder %s72, %s74
    %p81 = scmp.eq.s32.totalorder %s17, 1
    %p82 = por %p80, %p81
    %p83 = scmp.ne.s32.totalorder %s74, %s75
    %p84 = scmp.eq.s32.totalorder %s17, 0
    %p85 = por %p83, %p84
    %p86 = scmp.ne.s32.totalorder %s74, %s75
    %p87 = scmp.eq.s32.totalorder %s18, 1
    %p88 = por %p86, %p87
    %p90 = scmp.ne.s32.totalorder %s75, %s89
    %p91 = scmp.eq.s32.totalorder %s18, 0
    %p92 = por %p90, %p91
    %s94 = sadd.s32 %s93, 1
    %p97 = scmp.eq.s32.totalorder %s12, 1
    %p98 = scmp.ne.s32.totalorder %s93, %s95
    %p99 = scmp.eq.s32.totalorder %s12, 0
    %p100 = por %p98, %p99
    %p101 = scmp.ne.s32.totalorder %s93, %s95
    %p102 = scmp.eq.s32.totalorder %s17, 1
    %p103 = por %p101, %p102
    %p104 = scmp.ne.s32.totalorder %s95, %s96
    %p105 = scmp.eq.s32.totalorder %s17, 0
    %p106 = por %p104, %p105
    %p107 = scmp.ne.s32.totalorder %s95, %s96
    %p108 = scmp.eq.s32.totalorder %s18, 1
    %p109 = por %p107, %p108
    %p111 = scmp.ne.s32.totalorder %s96, %s110
    %p112 = scmp.eq.s32.totalorder %s18, 0
    %p113 = por %p111, %p112
    %s115 = sadd.s32 %s114, 1
    %p118 = scmp.eq.s32.totalorder %s12, 1
    %p119 = scmp.ne.s32.totalorder %s114, %s116
    %p120 = scmp.eq.s32.totalorder %s12, 0
    %p121 = por %p119, %p120
    %p122 = scmp.ne.s32.totalorder %s114, %s116
    %p123 = scmp.eq.s32.totalorder %s17, 1
    %p124 = por %p122, %p123
    %p125 = scmp.ne.s32.totalorder %s116, %s117
    %p126 = scmp.eq.s32.totalorder %s17, 0
    %p127 = por %p125, %p126
    %p128 = scmp.ne.s32.totalorder %s116, %s117
    %p129 = scmp.eq.s32.totalorder %s18, 1
    %p130 = por %p128, %p129
    %p132 = scmp.ne.s32.totalorder %s117, %s131
    %p133 = scmp.eq.s32.totalorder %s18, 0
    %p134 = por %p132, %p133
    %s136 = sadd.s32 %s135, 1
    %p139 = scmp.eq.s32.totalorder %s12, 1
    %p140 = scmp.ne.s32.totalorder %s135, %s137
    %p141 = scmp.eq.s32.totalorder %s12, 0
    %p142 = por %p140, %p141
    %p143 = scmp.ne.s32.totalorder %s135, %s137
    %p144 = scmp.eq.s32.totalorder %s17, 1
    %p145 = por %p143, %p144
    %p146 = scmp.ne.s32.totalorder %s137, %s138
    %p147 = scmp.eq.s32.totalorder %s17, 0
    %p148 = por %p146, %p147
    %p149 = scmp.ne.s32.totalorder %s137, %s138
    %p150 = scmp.eq.s32.totalorder %s18, 1
    %p151 = por %p149, %p150
    %p153 = scmp.ne.s32.totalorder %s138, %s152
    %p154 = scmp.eq.s32.totalorder %s18, 0
    %p155 = por %p153, %p154
    %s156 = ssub.s32 %s12, %s19
    %p157 = scmp.eq.s32.totalorder %s156, 0
    %s159 = sadd.s32 %s158, 1
    %s160 = scalar_select %p157, %s158, %s159
    %p163 = pneg %p157
    %p164 = scmp.eq.s32.totalorder %s12, 1
    %p165 = por %p163, %p164
    %p166 = scmp.ne.s32.totalorder %s158, %s161
    %p167 = scmp.eq.s32.totalorder %s12, 0
    %p168 = por %p166, %p167
    %p169 = scmp.ne.s32.totalorder %s158, %s161
    %p170 = scmp.eq.s32.totalorder %s17, 1
    %p171 = por %p169, %p170
    %p172 = scmp.ne.s32.totalorder %s161, %s162
    %p173 = scmp.eq.s32.totalorder %s17, 0
    %p174 = por %p172, %p173
    %p175 = scmp.ne.s32.totalorder %s161, %s162
    %p176 = scmp.eq.s32.totalorder %s18, 1
    %p177 = por %p175, %p176
    %p179 = scmp.ne.s32.totalorder %s162, %s178
    %p180 = scmp.eq.s32.totalorder %s18, 0
    %p181 = por %p179, %p180
    %p182 = scmp.le.s32.totalorder 1, %s12
    %p183 = scmp.lt.s32.totalorder %s12, 3
    %p184 = pnand %p182, %p183
    %p185 = pneg %p184
    // Predicated region
    $region9: #{freblock_forward.3} parent=5 // pred_check
      _
    $region10: #{freblock_forward.3} parent=5 // pred_check_branch
      %187 = sbr.rel (%p184) target = $region12
    $region11: #{freblock_forward.3} parent=5 // pred_region
      %s188 = ssub.s32 %s12, 1
      // Predicated region
      $region13: #{freblock_forward.3} parent=11 // pred_check
        %p189 = pneg %p85
      $region14: #{freblock_forward.3} parent=11 // pred_check_branch
        %191 = sbr.rel (%p189) target = $region16
      $region15: #{freblock_forward.3} parent=11 // pred_region
        _
      $region16: #{freblock_forward.3} parent=11 // pred_fallthru
        _
      // Predicated region
      $region17: #{freblock_forward.3} parent=11 // pred_check
        %p192 = pneg %p106
      $region18: #{freblock_forward.3} parent=11 // pred_check_branch
        %194 = sbr.rel (%p192) target = $region20
      $region19: #{freblock_forward.3} parent=11 // pred_region
        _
      $region20: #{freblock_forward.3} parent=11 // pred_fallthru
        _
      // Predicated region
      $region21: #{freblock_forward.3} parent=11 // pred_check
        %p195 = pneg %p127
      $region22: #{freblock_forward.3} parent=11 // pred_check_branch
        %197 = sbr.rel (%p195) target = $region24
      $region23: #{freblock_forward.3} parent=11 // pred_region
        _
      $region24: #{freblock_forward.3} parent=11 // pred_fallthru
        _
      // Predicated region
      $region25: #{freblock_forward.3} parent=11 // pred_check
        %p198 = pneg %p148
      $region26: #{freblock_forward.3} parent=11 // pred_check_branch
        %200 = sbr.rel (%p198) target = $region28
      $region27: #{freblock_forward.3} parent=11 // pred_region
        _
      $region28: #{freblock_forward.3} parent=11 // pred_fallthru
        _
    $region12: #{freblock_forward.3} parent=5 // pred_fallthru
      _
    %p201 = scmp.lt.s32.totalorder %s12, 2
    // Predicated region
    $region29: #{freblock_forward.3} parent=5 // pred_check
      %p202 = pneg %p201
    $region30: #{freblock_forward.3} parent=5 // pred_check_branch
      %204 = sbr.rel (%p202) target = $region32
    $region31: #{freblock_forward.3} parent=5 // pred_region
      // Predicated region
      $region33: #{freblock_forward.3} parent=31 // pred_check
        %p205 = pneg %p32
      $region34: #{freblock_forward.3} parent=31 // pred_check_branch
        %207 = sbr.rel (%p205) target = $region36
      $region35: #{freblock_forward.3} parent=31 // pred_region
        %p208 = scmp.lt.s32.totalorder %s12, 1
        %s209 = scalar_select %p208, %s12, 1
        %s210 = smul.addr %s209, 2
        %s211 = smul.addr %s210, 8
        %s212 = scalar_lea.vmem %s0, %s211
      $region36: #{freblock_forward.3} parent=31 // pred_fallthru
        _
      // Predicated region
      $region37: #{freblock_forward.3} parent=31 // pred_check
        %p213 = pneg %p58
      $region38: #{freblock_forward.3} parent=31 // pred_check_branch
        %215 = sbr.rel (%p213) target = $region40
      $region39: #{freblock_forward.3} parent=31 // pred_region
        %p216 = scmp.lt.s32.totalorder %s12, 1
        %s217 = scalar_select %p216, %s12, 1
        %s218 = smul.addr %s217, 2
        %s219 = smul.addr %s218, 8
        %s220 = scalar_lea.vmem %s1, %s219
      $region40: #{freblock_forward.3} parent=31 // pred_fallthru
        _
    $region32: #{freblock_forward.3} parent=5 // pred_fallthru
      _
    %p221 = scmp.le.s32.totalorder 1, %s12
    %p222 = scmp.lt.s32.totalorder %s12, 3
    %p223 = pnand %p221, %p222
    %p224 = pneg %p223
    // Predicated region
    $region41: #{freblock_forward.3} parent=5 // pred_check
      _
    $region42: #{freblock_forward.3} parent=5 // pred_check_branch
      %226 = sbr.rel (%p223) target = $region44
    $region43: #{freblock_forward.3} parent=5 // pred_region
      %s227 = ssub.s32 %s12, 1
      %p228 = scmp.lt.s32.totalorder %s17, 1
      %s229 = scalar_select %p228, %s17, 1
      %s230 = smul.addr %s229, 2
      %s231 = smul.addr %s230, 8
      %s232 = scalar_lea.vmem %s0, %s231
      %p233 = pneg %p38
      %p234 = pneg %p35
      %p235 = scmp.lt.s32.totalorder %s17, 1
      %s236 = scalar_select %p235, %s17, 1
      %s237 = smul.addr %s236, 2
      %s238 = smul.addr %s237, 8
      %s239 = scalar_lea.vmem %s1, %s238
      %p240 = pneg %p64
      %p241 = pneg %p61
      %p242 = pneg %p85
      %p243 = pneg %p82
      %p244 = pneg %p106
      %p245 = pneg %p103
      %p246 = pneg %p127
      %p247 = pneg %p124
      %p248 = pneg %p148
      %p249 = pneg %p145
      %p250 = pneg %p174
      %p251 = pneg %p171
      %p252 = scmp.lt.s32.totalorder %s17, 1
      %s253 = scalar_select %p252, %s17, 1
      %s254 = smul.addr %s253, 4
      %s255 = smul.addr %s254, 8
      %s256 = scalar_lea.vmem %s6, %s255
      %p257 = scmp.lt.s32.totalorder %s17, 1
      %s258 = scalar_select %p257, %s17, 1
      %s259 = smul.addr %s258, 2
      %s260 = smul.addr %s259, 8
      %s261 = scalar_lea.vmem %s0, %s260
      %p262 = scmp.lt.s32.totalorder %s17, 1
      %s263 = scalar_select %p262, %s17, 1
      %s264 = smul.addr %s263, 2
      %s265 = smul.addr %s264, 8
      %s266 = scalar_lea.vmem %s1, %s265
      %p267 = scmp.lt.s32.totalorder %s17, 1
      %s268 = scalar_select %p267, %s17, 1
      %s269 = smul.addr %s268, 4
      %s270 = smul.addr %s269, 8
      %s271 = scalar_lea.vmem %s6, %s270
      %v272 = vld [vmem:[%s261] sm:$0xff]
      %v273 = vld [vmem:[%s261 + $0x8] sm:$0xff]
      %v274 = vld [vmem:[%s266] sm:$0xff]
      %v275 = vld [vmem:[%s266 + $0x8] sm:$0xff]
      %v276 = vmul.f32 %v272, %v272
      %v277 = vmul.f32 %v273, %v273
      %v278 = vmul.f32 %v274, %v274
      %v279 = vmul.f32 %v275, %v275
      %v280 = vadd.f32 %v276, %v278
      %v281 = vadd.f32 %v277, %v279
      %v282 = vrsqrt.pop %v280
      %v283 = vmul.f32 %v282, %v280
      %v284 = vmul.f32 %v283, %v282
      %v285 = vmul.f32 0.5, %v284
      %v286 = vsub.f32 1.5, %v285
      %v287 = vmul.f32 %v282, %v286
      %v288 = vmul.f32 %v280, %v287
      %vm289 = vcmp.eq.f32.partialorder %v280, inf
      %v290 = vsel %vm289, %v280, %v288
      %vm291 = vcmp.eq.f32.partialorder %v280, 0.0
      %v292 = vand.u32 %v280, 2147483648
      %v293 = vsel %vm291, %v292, %v290
      %v294 = vrsqrt.pop %v281
      %v295 = vmul.f32 %v294, %v281
      %v296 = vmul.f32 %v295, %v294
      %v297 = vmul.f32 0.5, %v296
      %v298 = vsub.f32 1.5, %v297
      %v299 = vmul.f32 %v294, %v298
      %v300 = vmul.f32 %v281, %v299
      %vm301 = vcmp.eq.f32.partialorder %v281, inf
      %v302 = vsel %vm301, %v281, %v300
      %vm303 = vcmp.eq.f32.partialorder %v281, 0.0
      %v304 = vand.u32 %v281, 2147483648
      %v305 = vsel %vm303, %v304, %v302
      %v306 = vand.u32 2147483647, %v272
      %v307 = vand.u32 2147483647, %v274
      %v308 = vmin.f32 %v306, %v307
      %v309 = vmax.f32 %v306, %v307
      %v310 = vrcp.pop %v309
      %v311 = vmul.f32 %v309, %v310
      %v312 = vsub.f32 1.0, %v311
      %v313 = vmul.f32 %v310, %v312
      %v314 = vadd.f32 %v310, %v313
      %vm315 = vweird.f32 %v309
      %vm316 = vweird.f32 %v310
      %vm317 = vmor %vm315, %vm316
      %v318 = vsel %vm317, %v310, %v314
      %v319 = vand.u32 2147483647, %v309
      %vm320 = vcmp.eq.f32.partialorder %v319, 8.507059e+37
      %v321 = vand.u32 %v309, 2147483648
      %v322 = vor.u32 1.1754944e-38, %v321
      %v323 = vsel %vm320, %v322, %v318
      %v324 = vmul.f32 %v308, %v323
      %v325 = vmul.f32 %v324, %v324
      %v326 = vmul.f32 0.002785687, %v325
      %v327 = vadd.f32 %v326, -0.015866
      %v328 = vmul.f32 %v327, %v325
      %v329 = vadd.f32 %v328, 0.04247222
      %v330 = vmul.f32 %v329, %v325
      %v331 = vadd.f32 %v330, -0.074975304
      %v332 = vmul.f32 %v331, %v325
      %v333 = vadd.f32 %v332, 0.1064488
      %v334 = vmul.f32 %v333, %v325
      %v335 = vadd.f32 %v334, -0.14207031
      %v336 = vmul.f32 %v335, %v325
      %v337 = vadd.f32 %v336, 0.19993454
      %v338 = vmul.f32 %v337, %v325
      %v339 = vadd.f32 %v338, -0.33333147
      %v340 = vmul.f32 %v339, %v325
      %v341 = vmul.f32 %v340, %v324
      %v342 = vadd.f32 %v341, %v324
      %vm343 = vcmp.gt.f32.partialorder %v307, %v306
      %v344 = vsub.f32 1.5707964, %v342
      %v345 = vsel %vm343, %v344, %v342
      %vm346 = vcmp.lt.f32.partialorder %v272, 0.0
      %v347 = vsub.f32 3.1415927, %v345
      %v348 = vsel %vm346, %v347, %v345
      %vm349 = vcmp.lt.s32.totalorder %v272, 0
      %v350 = vsel %vm349, 3.1415927, 0.0
      %vm351 = vcmp.eq.f32.partialorder %v274, 0.0
      %v352 = vsel %vm351, %v350, %v348
      %vm353 = vcmp.ne.f32.partialorder %v272, %v272
      %vm354 = vcmp.ne.f32.partialorder %v274, %v274
      %vm355 = vmor %vm353, %vm354
      %v356 = vsel %vm355, nan, %v352
      %vm357 = vcmp.lt.f32.partialorder %v272, 0.0
      %v358 = vsel %vm357, 2.3561945, 0.7853982
      %vm359 = vcmp.eq.s32.totalorder %v306, inf
      %vm360 = vcmp.eq.s32.totalorder %v307, inf
      %vm361 = vmand %vm359, %vm360
      %v362 = vsel %vm361, %v358, %v356
      %v363 = vand.u32 2147483647, %v362
      %v364 = vand.u32 %v274, 2147483648
      %v365 = vor.u32 %v363, %v364
      %v366 = vand.u32 2147483647, %v273
      %v367 = vand.u32 2147483647, %v275
      %v368 = vmin.f32 %v366, %v367
      %v369 = vmax.f32 %v366, %v367
      %v370 = vrcp.pop %v369
      %v371 = vmul.f32 %v369, %v370
      %v372 = vsub.f32 1.0, %v371
      %v373 = vmul.f32 %v370, %v372
      %v374 = vadd.f32 %v370, %v373
      %vm375 = vweird.f32 %v369
      %vm376 = vweird.f32 %v370
      %vm377 = vmor %vm375, %vm376
      %v378 = vsel %vm377, %v370, %v374
      %v379 = vand.u32 2147483647, %v369
      %vm380 = vcmp.eq.f32.partialorder %v379, 8.507059e+37
      %v381 = vand.u32 %v369, 2147483648
      %v382 = vor.u32 1.1754944e-38, %v381
      %v383 = vsel %vm380, %v382, %v378
      %v384 = vmul.f32 %v368, %v383
      %v385 = vmul.f32 %v384, %v384
      %v386 = vmul.f32 0.002785687, %v385
      %v387 = vadd.f32 %v386, -0.015866
      %v388 = vmul.f32 %v387, %v385
      %v389 = vadd.f32 %v388, 0.04247222
      %v390 = vmul.f32 %v389, %v385
      %v391 = vadd.f32 %v390, -0.074975304
      %v392 = vmul.f32 %v391, %v385
      %v393 = vadd.f32 %v392, 0.1064488
      %v394 = vmul.f32 %v393, %v385
      %v395 = vadd.f32 %v394, -0.14207031
      %v396 = vmul.f32 %v395, %v385
      %v397 = vadd.f32 %v396, 0.19993454
      %v398 = vmul.f32 %v397, %v385
      %v399 = vadd.f32 %v398, -0.33333147
      %v400 = vmul.f32 %v399, %v385
      %v401 = vmul.f32 %v400, %v384
      %v402 = vadd.f32 %v401, %v384
      %vm403 = vcmp.gt.f32.partialorder %v367, %v366
      %v404 = vsub.f32 1.5707964, %v402
      %v405 = vsel %vm403, %v404, %v402
      %vm406 = vcmp.lt.f32.partialorder %v273, 0.0
      %v407 = vsub.f32 3.1415927, %v405
      %v408 = vsel %vm406, %v407, %v405
      %vm409 = vcmp.lt.s32.totalorder %v273, 0
      %v410 = vsel %vm409, 3.1415927, 0.0
      %vm411 = vcmp.eq.f32.partialorder %v275, 0.0
      %v412 = vsel %vm411, %v410, %v408
      %vm413 = vcmp.ne.f32.partialorder %v273, %v273
      %vm414 = vcmp.ne.f32.partialorder %v275, %v275
      %vm415 = vmor %vm413, %vm414
      %v416 = vsel %vm415, nan, %v412
      %vm417 = vcmp.lt.f32.partialorder %v273, 0.0
      %v418 = vsel %vm417, 2.3561945, 0.7853982
      %vm419 = vcmp.eq.s32.totalorder %v366, inf
      %vm420 = vcmp.eq.s32.totalorder %v367, inf
      %vm421 = vmand %vm419, %vm420
      %v422 = vsel %vm421, %v418, %v416
      %v423 = vand.u32 2147483647, %v422
      %v424 = vand.u32 %v275, 2147483648
      %v425 = vor.u32 %v423, %v424
      %v426 = vld [vmem:[%s2] sm:$0xff]
      %v427 = vld [vmem:[%s2 + $0x8] sm:$0xff]
      %v428 = vld [vmem:[%s3] sm:$0xff]
      %v429 = vld [vmem:[%s3 + $0x8] sm:$0xff]
      %431 = vset.pattern.permute.xlu0 0
      %432 = vperm.xlu0 %431, %v428
      %v433 = vpop.permute.xlu0 %432
      %436 = vset.pattern.permute.xlu0 0
      %437 = vperm.xlu0 %436, %v429
      %v438 = vpop.permute.xlu0 %437
      %vm440 = vcmask 130048
      %v442 = vsel %vm440, %v426, 0
      %v445 = vsel %vm440, %v427, 0
      %447 = vmatpush.msra.mxu0 0.0
      %448 = vmatpush.msra.mxu0 0.0
      %449 = vmatpush.msra.mxu0 0.0
      %450 = vmatpush.msra.mxu0 0.0
      %451 = vmatpush.msra.mxu0 0.0
      %452 = vmatpush.msra.mxu0 0.0
      %453 = vmatpush.msra.mxu0 0.0
      %454 = vmatpush.msra.mxu0 0.0
      %455 = vmatpush.msra.mxu0 0.0
      %456 = vmatpush.msra.mxu0 0.0
      %457 = vmatpush.msra.mxu0 0.0
      %458 = vmatpush.msra.mxu0 0.0
      %459 = vmatpush.msra.mxu0 0.0
      %460 = vmatpush.msra.mxu0 0.0
      %461 = vmatpush.msra.mxu0 %v365
      %462 = vmatpush.msra.mxu0 %v293
      %463 = vmatmul.f32.gmra.mxu0 %v442
      %v464 = vpop.f32.mrf.mxu0
      %v465 = vadd.f32 %v433, %v464
      %466 = vmatmul.f32.gmra.mxu0 %v445
      %v467 = vpop.f32.mrf.mxu0
      %v468 = vadd.f32 %v438, %v467
      %469 = vdwg.mxu0
      %470 = vmatpush.msra.mxu0 0.0
      %471 = vmatpush.msra.mxu0 0.0
      %472 = vmatpush.msra.mxu0 0.0
      %473 = vmatpush.msra.mxu0 0.0
      %474 = vmatpush.msra.mxu0 0.0
      %475 = vmatpush.msra.mxu0 0.0
      %476 = vmatpush.msra.mxu0 0.0
      %477 = vmatpush.msra.mxu0 0.0
      %478 = vmatpush.msra.mxu0 0.0
      %479 = vmatpush.msra.mxu0 0.0
      %480 = vmatpush.msra.mxu0 0.0
      %481 = vmatpush.msra.mxu0 0.0
      %482 = vmatpush.msra.mxu0 0.0
      %483 = vmatpush.msra.mxu0 0.0
      %484 = vmatpush.msra.mxu0 %v425
      %485 = vmatpush.msra.mxu0 %v305
      %486 = vmatmul.f32.gmra.mxu0 %v442
      %v487 = vpop.f32.mrf.mxu0
      %v488 = vadd.f32 %v433, %v487
      %489 = vmatmul.f32.gmra.mxu0 %v445
      %v490 = vpop.f32.mrf.mxu0
      %v491 = vadd.f32 %v438, %v490
      %492 = vdwg.mxu0
      %vm493 = vcmp.ge.f32.partialorder %v465, 0.0
      %vm494 = vcmp.ge.f32.partialorder %v488, 0.0
      %vm495 = vcmp.ge.f32.partialorder %v468, 0.0
      %vm496 = vcmp.ge.f32.partialorder %v491, 0.0
      %v497 = vmul.f32 %v465, 0.1
      %v498 = vmul.f32 %v488, 0.1
      %v499 = vmul.f32 %v468, 0.1
      %v500 = vmul.f32 %v491, 0.1
      %v501 = vsel %vm493, %v465, %v497
      %v502 = vsel %vm494, %v488, %v498
      %v503 = vsel %vm495, %v468, %v499
      %v504 = vsel %vm496, %v491, %v500
      %v505 = vld [vmem:[%s4] sm:$0xff]
      %v506 = vld [vmem:[%s4 + $0x8] sm:$0xff]
      %v507 = vld [vmem:[%s5] sm:$0xff]
      %v508 = vld [vmem:[%s5 + $0x8] sm:$0xff]
      %510 = vset.pattern.permute.xlu0 0
      %511 = vperm.xlu0 %510, %v507
      %v512 = vpop.permute.xlu0 %511
      %515 = vset.pattern.permute.xlu0 0
      %516 = vperm.xlu0 %515, %v508
      %v517 = vpop.permute.xlu0 %516
      %v520 = vsel %vm440, %v505, 0
      %v523 = vsel %vm440, %v506, 0
      %525 = vmatpush.msra.mxu0 0.0
      %526 = vmatpush.msra.mxu0 0.0
      %527 = vmatpush.msra.mxu0 0.0
      %528 = vmatpush.msra.mxu0 0.0
      %529 = vmatpush.msra.mxu0 0.0
      %530 = vmatpush.msra.mxu0 0.0
      %531 = vmatpush.msra.mxu0 0.0
      %532 = vmatpush.msra.mxu0 0.0
      %533 = vmatpush.msra.mxu0 0.0
      %534 = vmatpush.msra.mxu0 0.0
      %535 = vmatpush.msra.mxu0 0.0
      %536 = vmatpush.msra.mxu0 0.0
      %537 = vmatpush.msra.mxu0 0.0
      %538 = vmatpush.msra.mxu0 0.0
      %539 = vmatpush.msra.mxu0 %v503
      %540 = vmatpush.msra.mxu0 %v501
      %541 = vmatmul.f32.gmra.mxu0 %v520
      %v542 = vpop.f32.mrf.mxu0
      %v543 = vadd.f32 %v512, %v542
      %544 = vmatmul.f32.gmra.mxu0 %v523
      %v545 = vpop.f32.mrf.mxu0
      %v546 = vadd.f32 %v517, %v545
      %547 = vdwg.mxu0
      %548 = vmatpush.msra.mxu0 0.0
      %549 = vmatpush.msra.mxu0 0.0
      %550 = vmatpush.msra.mxu0 0.0
      %551 = vmatpush.msra.mxu0 0.0
      %552 = vmatpush.msra.mxu0 0.0
      %553 = vmatpush.msra.mxu0 0.0
      %554 = vmatpush.msra.mxu0 0.0
      %555 = vmatpush.msra.mxu0 0.0
      %556 = vmatpush.msra.mxu0 0.0
      %557 = vmatpush.msra.mxu0 0.0
      %558 = vmatpush.msra.mxu0 0.0
      %559 = vmatpush.msra.mxu0 0.0
      %560 = vmatpush.msra.mxu0 0.0
      %561 = vmatpush.msra.mxu0 0.0
      %562 = vmatpush.msra.mxu0 %v504
      %563 = vmatpush.msra.mxu0 %v502
      %564 = vmatmul.f32.gmra.mxu0 %v520
      %v565 = vpop.f32.mrf.mxu0
      %v566 = vadd.f32 %v512, %v565
      %567 = vmatmul.f32.gmra.mxu0 %v523
      %v568 = vpop.f32.mrf.mxu0
      %v569 = vadd.f32 %v517, %v568
      %570 = vdwg.mxu0
      %v571 = vand.u32 2147483647, %v546
      %vm572 = vcmp.le.f32.partialorder %v571, 0.7853982
      %vm573 = vcmp.lt.s32.totalorder %v546, 0
      %v574 = vand.u32 %v546, 2139095040
      %v575 = vshrl.u32 %v574, 23
      %v576 = vsub.s32 %v575, 127
      %v577 = vand.u32 2147483647, %v546
      %v578 = vand.u32 %v577, 8388607
      %v579 = vor.u32 %v578, 8388608
      %v580 = vsub.s32 0, %v579
      %v581 = vadd.s32 %v576, 1
      %vm582 = vcmp.gt.s32.totalorder %v581, 0
      %v583 = vsel %vm582, %v581, 0
      %v584 = vshrl.u32 %v583, 5
      %v585 = vand.u32 %v583, 31
      %v586 = vsub.s32 32, %v585
      %v587 = vshrl.u32 683565275, %v586
      %v588 = vshll.u32 683565275, %v585
      %v589 = vshrl.u32 2475754826, %v586
      %v590 = vor.u32 %v588, %v589
      %v591 = vshll.u32 2475754826, %v585
      %v592 = vshrl.u32 2131351028, %v586
      %v593 = vor.u32 %v591, %v592
      %v594 = vshll.u32 2131351028, %v585
      %v595 = vshrl.u32 2102212464, %v586
      %v596 = vor.u32 %v594, %v595
      %v597 = vshll.u32 2102212464, %v585
      %v598 = vshrl.u32 920167782, %v586
      %v599 = vor.u32 %v597, %v598
      %v600 = vshll.u32 920167782, %v585
      %v601 = vshrl.u32 1326507024, %v586
      %v602 = vor.u32 %v600, %v601
      %vm603 = vcmp.lt.s32.totalorder %v584, 1
      %vm604 = vcmp.lt.s32.totalorder %v584, 2
      %vm605 = vcmp.lt.s32.totalorder %v584, 3
      %vm606 = vcmp.lt.s32.totalorder %v584, 4
      %v607 = vsel %vm603, %v587, %v590
      %v608 = vsel %vm606, %v596, 2102212464
      %v609 = vsel %vm605, %v593, %v608
      %v610 = vsel %vm604, %v607, %v609
      %v611 = vsel %vm603, %v590, %v593
      %v612 = vsel %vm606, %v599, 920167782
      %v613 = vsel %vm605, %v596, %v612
      %v614 = vsel %vm604, %v611, %v613
      %v615 = vsel %vm603, %v593, %v596
      %v616 = vsel %vm606, %v602, 1326507024
      %v617 = vsel %vm605, %v599, %v616
      %v618 = vsel %vm604, %v615, %v617
      %v619 = vshll.u32 %v579, 8
      %v620 = vand.u32 %v619, 65535
      %v621 = vshrl.u32 %v619, 16
      %v622 = vand.u32 %v618, 65535
      %v623 = vshrl.u32 %v618, 16
      %v624 = vmul.u32 %v620, %v622
      %v625 = vmul.u32 %v620, %v623
      %v626 = vmul.u32 %v621, %v622
      %v627 = vmul.u32 %v621, %v623
      %v628 = vshll.u32 %v625, 16
      %v629 = vshrl.u32 %v625, 16
      %v630 = vshll.u32 %v626, 16
      %v631 = vshrl.u32 %v626, 16
      %vm632 = vc.u32 %v624, %v628
      %v633 = vsel %vm632, 1, 0
      %v634 = vadd.s32 %v624, %v628
      %v635 = vadd.s32 %v627, %v633
      %vm636 = vc.u32 %v634, %v630
      %v637 = vsel %vm636, 1, 0
      %v638 = vadd.s32 %v634, %v630
      %v639 = vadd.s32 %v635, %v637
      %v640 = vadd.s32 %v639, %v629
      %v641 = vadd.s32 %v640, %v631
      %v642 = vand.u32 %v619, 65535
      %v643 = vshrl.u32 %v619, 16
      %v644 = vand.u32 %v614, 65535
      %v645 = vshrl.u32 %v614, 16
      %v646 = vmul.u32 %v642, %v644
      %v647 = vmul.u32 %v642, %v645
      %v648 = vmul.u32 %v643, %v644
      %v649 = vmul.u32 %v643, %v645
      %v650 = vshll.u32 %v647, 16
      %v651 = vshrl.u32 %v647, 16
      %v652 = vshll.u32 %v648, 16
      %v653 = vshrl.u32 %v648, 16
      %vm654 = vc.u32 %v646, %v650
      %v655 = vsel %vm654, 1, 0
      %v656 = vadd.s32 %v646, %v650
      %v657 = vadd.s32 %v649, %v655
      %vm658 = vc.u32 %v656, %v652
      %v659 = vsel %vm658, 1, 0
      %v660 = vadd.s32 %v656, %v652
      %v661 = vadd.s32 %v657, %v659
      %v662 = vadd.s32 %v661, %v651
      %v663 = vadd.s32 %v662, %v653
      %v664 = vmul.u32 %v619, %v610
      %v665 = vadd.s32 %v641, %v660
      %vm666 = vc.u32 %v641, %v660
      %v667 = vadd.s32 %v663, 1
      %v668 = vsel %vm666, %v667, %v663
      %v669 = vadd.s32 %v664, %v668
      %v670 = vadd.s32 %v669, 536870912
      %v671 = vshrl.u32 %v670, 30
      %v672 = vshll.u32 %v671, 30
      %v673 = vsub.s32 %v669, %v672
      %vm674 = vcmp.lt.s32.totalorder %v673, 0
      %v675 = vsub.s32 0, %v673
      %v676 = vsel %vm674, %v675, %v673
      %v677 = vclz %v676
      %v678 = vsub.s32 %v677, 2
      %vm679 = vcmp.gt.s32.totalorder 0, %v678
      %v680 = vsel %vm679, 0, %v678
      %v681 = vsub.s32 32, %v680
      %v682 = vshll.u32 %v673, %v680
      %v683 = vshrl.u32 %v665, %v681
      %v684 = vor.u32 %v682, %v683
      %v685 = vsub.s32 4294967266, %v680
      %v686 = vadd.s32 %v685, 127
      %v687 = vshll.u32 %v686, 23
      %v688 = vor.u32 4788187, %v687
      %v689 = vand.u32 2147483647, %v688
      %v691 = vcvt.s32.f32 %v684
      %v692 = vmul.f32 %v691, %v689
      %v693 = vxor.u32 %v692, 2147483648
      %v694 = vsel %vm573, %v693, %v692
      %v695 = vsub.s32 4, %v671
      %v696 = vsel %vm573, %v695, %v671
      %v697 = vsel %vm572, %v546, %v694
      %v698 = vsel %vm572, 0, %v696
      %v699 = vmul.f32 %v697, %v697
      %v700 = vmul.f32 %v699, -0.001358992
      %v701 = vadd.f32 %v700, 0.041655596
      %v702 = vmul.f32 %v699, %v701
      %v703 = vadd.f32 %v702, -0.4999988
      %v704 = vmul.f32 %v699, %v703
      %v705 = vadd.f32 1.0, %v704
      %v706 = vmul.f32 %v697, %v697
      %v707 = vmul.f32 %v706, -0.00019511016
      %v708 = vadd.f32 %v707, 0.008332121
      %v709 = vmul.f32 %v706, %v708
      %v710 = vadd.f32 %v709, -0.16666654
      %v711 = vmul.f32 %v706, %v710
      %v712 = vadd.f32 %v711, 1.0
      %v713 = vmul.f32 %v712, %v697
      %vm714 = vweird.f32 %v546
      %v715 = vand.u32 %v698, 3
      %vm716 = vcmp.lt.s32.totalorder %v715, 2
      %vm717 = vcmp.eq.s32.totalorder %v715, 0
      %v718 = vxor.u32 %v713, 2147483648
      %v719 = vsel %vm717, %v705, %v718
      %vm720 = vcmp.eq.s32.totalorder %v715, 2
      %v721 = vxor.u32 %v705, 2147483648
      %v722 = vsel %vm720, %v721, %v713
      %v723 = vsel %vm716, %v719, %v722
      %v724 = vsel %vm714, nan, %v723
      %v725 = vand.u32 2147483647, %v569
      %vm726 = vcmp.le.f32.partialorder %v725, 0.7853982
      %vm727 = vcmp.lt.s32.totalorder %v569, 0
      %v728 = vand.u32 %v569, 2139095040
      %v729 = vshrl.u32 %v728, 23
      %v730 = vsub.s32 %v729, 127
      %v731 = vand.u32 2147483647, %v569
      %v732 = vand.u32 %v731, 8388607
      %v733 = vor.u32 %v732, 8388608
      %v734 = vsub.s32 0, %v733
      %v735 = vadd.s32 %v730, 1
      %vm736 = vcmp.gt.s32.totalorder %v735, 0
      %v737 = vsel %vm736, %v735, 0
      %v738 = vshrl.u32 %v737, 5
      %v739 = vand.u32 %v737, 31
      %v740 = vsub.s32 32, %v739
      %v741 = vshrl.u32 683565275, %v740
      %v742 = vshll.u32 683565275, %v739
      %v743 = vshrl.u32 2475754826, %v740
      %v744 = vor.u32 %v742, %v743
      %v745 = vshll.u32 2475754826, %v739
      %v746 = vshrl.u32 2131351028, %v740
      %v747 = vor.u32 %v745, %v746
      %v748 = vshll.u32 2131351028, %v739
      %v749 = vshrl.u32 2102212464, %v740
      %v750 = vor.u32 %v748, %v749
      %v751 = vshll.u32 2102212464, %v739
      %v752 = vshrl.u32 920167782, %v740
      %v753 = vor.u32 %v751, %v752
      %v754 = vshll.u32 920167782, %v739
      %v755 = vshrl.u32 1326507024, %v740
      %v756 = vor.u32 %v754, %v755
      %vm757 = vcmp.lt.s32.totalorder %v738, 1
      %vm758 = vcmp.lt.s32.totalorder %v738, 2
      %vm759 = vcmp.lt.s32.totalorder %v738, 3
      %vm760 = vcmp.lt.s32.totalorder %v738, 4
      %v761 = vsel %vm757, %v741, %v744
      %v762 = vsel %vm760, %v750, 2102212464
      %v763 = vsel %vm759, %v747, %v762
      %v764 = vsel %vm758, %v761, %v763
      %v765 = vsel %vm757, %v744, %v747
      %v766 = vsel %vm760, %v753, 920167782
      %v767 = vsel %vm759, %v750, %v766
      %v768 = vsel %vm758, %v765, %v767
      %v769 = vsel %vm757, %v747, %v750
      %v770 = vsel %vm760, %v756, 1326507024
      %v771 = vsel %vm759, %v753, %v770
      %v772 = vsel %vm758, %v769, %v771
      %v773 = vshll.u32 %v733, 8
      %v774 = vand.u32 %v773, 65535
      %v775 = vshrl.u32 %v773, 16
      %v776 = vand.u32 %v772, 65535
      %v777 = vshrl.u32 %v772, 16
      %v778 = vmul.u32 %v774, %v776
      %v779 = vmul.u32 %v774, %v777
      %v780 = vmul.u32 %v775, %v776
      %v781 = vmul.u32 %v775, %v777
      %v782 = vshll.u32 %v779, 16
      %v783 = vshrl.u32 %v779, 16
      %v784 = vshll.u32 %v780, 16
      %v785 = vshrl.u32 %v780, 16
      %vm786 = vc.u32 %v778, %v782
      %v787 = vsel %vm786, 1, 0
      %v788 = vadd.s32 %v778, %v782
      %v789 = vadd.s32 %v781, %v787
      %vm790 = vc.u32 %v788, %v784
      %v791 = vsel %vm790, 1, 0
      %v792 = vadd.s32 %v788, %v784
      %v793 = vadd.s32 %v789, %v791
      %v794 = vadd.s32 %v793, %v783
      %v795 = vadd.s32 %v794, %v785
      %v796 = vand.u32 %v773, 65535
      %v797 = vshrl.u32 %v773, 16
      %v798 = vand.u32 %v768, 65535
      %v799 = vshrl.u32 %v768, 16
      %v800 = vmul.u32 %v796, %v798
      %v801 = vmul.u32 %v796, %v799
      %v802 = vmul.u32 %v797, %v798
      %v803 = vmul.u32 %v797, %v799
      %v804 = vshll.u32 %v801, 16
      %v805 = vshrl.u32 %v801, 16
      %v806 = vshll.u32 %v802, 16
      %v807 = vshrl.u32 %v802, 16
      %vm808 = vc.u32 %v800, %v804
      %v809 = vsel %vm808, 1, 0
      %v810 = vadd.s32 %v800, %v804
      %v811 = vadd.s32 %v803, %v809
      %vm812 = vc.u32 %v810, %v806
      %v813 = vsel %vm812, 1, 0
      %v814 = vadd.s32 %v810, %v806
      %v815 = vadd.s32 %v811, %v813
      %v816 = vadd.s32 %v815, %v805
      %v817 = vadd.s32 %v816, %v807
      %v818 = vmul.u32 %v773, %v764
      %v819 = vadd.s32 %v795, %v814
      %vm820 = vc.u32 %v795, %v814
      %v821 = vadd.s32 %v817, 1
      %v822 = vsel %vm820, %v821, %v817
      %v823 = vadd.s32 %v818, %v822
      %v824 = vadd.s32 %v823, 536870912
      %v825 = vshrl.u32 %v824, 30
      %v826 = vshll.u32 %v825, 30
      %v827 = vsub.s32 %v823, %v826
      %vm828 = vcmp.lt.s32.totalorder %v827, 0
      %v829 = vsub.s32 0, %v827
      %v830 = vsel %vm828, %v829, %v827
      %v831 = vclz %v830
      %v832 = vsub.s32 %v831, 2
      %vm833 = vcmp.gt.s32.totalorder 0, %v832
      %v834 = vsel %vm833, 0, %v832
      %v835 = vsub.s32 32, %v834
      %v836 = vshll.u32 %v827, %v834
      %v837 = vshrl.u32 %v819, %v835
      %v838 = vor.u32 %v836, %v837
      %v839 = vsub.s32 4294967266, %v834
      %v840 = vadd.s32 %v839, 127
      %v841 = vshll.u32 %v840, 23
      %v842 = vor.u32 4788187, %v841
      %v843 = vand.u32 2147483647, %v842
      %v845 = vcvt.s32.f32 %v838
      %v846 = vmul.f32 %v845, %v843
      %v847 = vxor.u32 %v846, 2147483648
      %v848 = vsel %vm727, %v847, %v846
      %v849 = vsub.s32 4, %v825
      %v850 = vsel %vm727, %v849, %v825
      %v851 = vsel %vm726, %v569, %v848
      %v852 = vsel %vm726, 0, %v850
      %v853 = vmul.f32 %v851, %v851
      %v854 = vmul.f32 %v853, -0.001358992
      %v855 = vadd.f32 %v854, 0.041655596
      %v856 = vmul.f32 %v853, %v855
      %v857 = vadd.f32 %v856, -0.4999988
      %v858 = vmul.f32 %v853, %v857
      %v859 = vadd.f32 1.0, %v858
      %v860 = vmul.f32 %v851, %v851
      %v861 = vmul.f32 %v860, -0.00019511016
      %v862 = vadd.f32 %v861, 0.008332121
      %v863 = vmul.f32 %v860, %v862
      %v864 = vadd.f32 %v863, -0.16666654
      %v865 = vmul.f32 %v860, %v864
      %v866 = vadd.f32 %v865, 1.0
      %v867 = vmul.f32 %v866, %v851
      %vm868 = vweird.f32 %v569
      %v869 = vand.u32 %v852, 3
      %vm870 = vcmp.lt.s32.totalorder %v869, 2
      %vm871 = vcmp.eq.s32.totalorder %v869, 0
      %v872 = vxor.u32 %v867, 2147483648
      %v873 = vsel %vm871, %v859, %v872
      %vm874 = vcmp.eq.s32.totalorder %v869, 2
      %v875 = vxor.u32 %v859, 2147483648
      %v876 = vsel %vm874, %v875, %v867
      %v877 = vsel %vm870, %v873, %v876
      %v878 = vsel %vm868, nan, %v877
      %v879 = vmul.f32 %v543, %v724
      %v880 = vmul.f32 %v566, %v878
      %v881 = vand.u32 2147483647, %v546
      %vm882 = vcmp.le.f32.partialorder %v881, 0.7853982
      %vm883 = vcmp.lt.s32.totalorder %v546, 0
      %v884 = vand.u32 %v546, 2139095040
      %v885 = vshrl.u32 %v884, 23
      %v886 = vsub.s32 %v885, 127
      %v887 = vand.u32 2147483647, %v546
      %v888 = vand.u32 %v887, 8388607
      %v889 = vor.u32 %v888, 8388608
      %v890 = vsub.s32 0, %v889
      %v891 = vadd.s32 %v886, 1
      %vm892 = vcmp.gt.s32.totalorder %v891, 0
      %v893 = vsel %vm892, %v891, 0
      %v894 = vshrl.u32 %v893, 5
      %v895 = vand.u32 %v893, 31
      %v896 = vsub.s32 32, %v895
      %v897 = vshrl.u32 683565275, %v896
      %v898 = vshll.u32 683565275, %v895
      %v899 = vshrl.u32 2475754826, %v896
      %v900 = vor.u32 %v898, %v899
      %v901 = vshll.u32 2475754826, %v895
      %v902 = vshrl.u32 2131351028, %v896
      %v903 = vor.u32 %v901, %v902
      %v904 = vshll.u32 2131351028, %v895
      %v905 = vshrl.u32 2102212464, %v896
      %v906 = vor.u32 %v904, %v905
      %v907 = vshll.u32 2102212464, %v895
      %v908 = vshrl.u32 920167782, %v896
      %v909 = vor.u32 %v907, %v908
      %v910 = vshll.u32 920167782, %v895
      %v911 = vshrl.u32 1326507024, %v896
      %v912 = vor.u32 %v910, %v911
      %vm913 = vcmp.lt.s32.totalorder %v894, 1
      %vm914 = vcmp.lt.s32.totalorder %v894, 2
      %vm915 = vcmp.lt.s32.totalorder %v894, 3
      %vm916 = vcmp.lt.s32.totalorder %v894, 4
      %v917 = vsel %vm913, %v897, %v900
      %v918 = vsel %vm916, %v906, 2102212464
      %v919 = vsel %vm915, %v903, %v918
      %v920 = vsel %vm914, %v917, %v919
      %v921 = vsel %vm913, %v900, %v903
      %v922 = vsel %vm916, %v909, 920167782
      %v923 = vsel %vm915, %v906, %v922
      %v924 = vsel %vm914, %v921, %v923
      %v925 = vsel %vm913, %v903, %v906
      %v926 = vsel %vm916, %v912, 1326507024
      %v927 = vsel %vm915, %v909, %v926
      %v928 = vsel %vm914, %v925, %v927
      %v929 = vshll.u32 %v889, 8
      %v930 = vand.u32 %v929, 65535
      %v931 = vshrl.u32 %v929, 16
      %v932 = vand.u32 %v928, 65535
      %v933 = vshrl.u32 %v928, 16
      %v934 = vmul.u32 %v930, %v932
      %v935 = vmul.u32 %v930, %v933
      %v936 = vmul.u32 %v931, %v932
      %v937 = vmul.u32 %v931, %v933
      %v938 = vshll.u32 %v935, 16
      %v939 = vshrl.u32 %v935, 16
      %v940 = vshll.u32 %v936, 16
      %v941 = vshrl.u32 %v936, 16
      %vm942 = vc.u32 %v934, %v938
      %v943 = vsel %vm942, 1, 0
      %v944 = vadd.s32 %v934, %v938
      %v945 = vadd.s32 %v937, %v943
      %vm946 = vc.u32 %v944, %v940
      %v947 = vsel %vm946, 1, 0
      %v948 = vadd.s32 %v944, %v940
      %v949 = vadd.s32 %v945, %v947
      %v950 = vadd.s32 %v949, %v939
      %v951 = vadd.s32 %v950, %v941
      %v952 = vand.u32 %v929, 65535
      %v953 = vshrl.u32 %v929, 16
      %v954 = vand.u32 %v924, 65535
      %v955 = vshrl.u32 %v924, 16
      %v956 = vmul.u32 %v952, %v954
      %v957 = vmul.u32 %v952, %v955
      %v958 = vmul.u32 %v953, %v954
      %v959 = vmul.u32 %v953, %v955
      %v960 = vshll.u32 %v957, 16
      %v961 = vshrl.u32 %v957, 16
      %v962 = vshll.u32 %v958, 16
      %v963 = vshrl.u32 %v958, 16
      %vm964 = vc.u32 %v956, %v960
      %v965 = vsel %vm964, 1, 0
      %v966 = vadd.s32 %v956, %v960
      %v967 = vadd.s32 %v959, %v965
      %vm968 = vc.u32 %v966, %v962
      %v969 = vsel %vm968, 1, 0
      %v970 = vadd.s32 %v966, %v962
      %v971 = vadd.s32 %v967, %v969
      %v972 = vadd.s32 %v971, %v961
      %v973 = vadd.s32 %v972, %v963
      %v974 = vmul.u32 %v929, %v920
      %v975 = vadd.s32 %v951, %v970
      %vm976 = vc.u32 %v951, %v970
      %v977 = vadd.s32 %v973, 1
      %v978 = vsel %vm976, %v977, %v973
      %v979 = vadd.s32 %v974, %v978
      %v980 = vadd.s32 %v979, 536870912
      %v981 = vshrl.u32 %v980, 30
      %v982 = vshll.u32 %v981, 30
      %v983 = vsub.s32 %v979, %v982
      %vm984 = vcmp.lt.s32.totalorder %v983, 0
      %v985 = vsub.s32 0, %v983
      %v986 = vsel %vm984, %v985, %v983
      %v987 = vclz %v986
      %v988 = vsub.s32 %v987, 2
      %vm989 = vcmp.gt.s32.totalorder 0, %v988
      %v990 = vsel %vm989, 0, %v988
      %v991 = vsub.s32 32, %v990
      %v992 = vshll.u32 %v983, %v990
      %v993 = vshrl.u32 %v975, %v991
      %v994 = vor.u32 %v992, %v993
      %v995 = vsub.s32 4294967266, %v990
      %v996 = vadd.s32 %v995, 127
      %v997 = vshll.u32 %v996, 23
      %v998 = vor.u32 4788187, %v997
      %v999 = vand.u32 2147483647, %v998
      %v1001 = vcvt.s32.f32 %v994
      %v1002 = vmul.f32 %v1001, %v999
      %v1003 = vxor.u32 %v1002, 2147483648
      %v1004 = vsel %vm883, %v1003, %v1002
      %v1005 = vsub.s32 4, %v981
      %v1006 = vsel %vm883, %v1005, %v981
      %v1007 = vsel %vm882, %v546, %v1004
      %v1008 = vsel %vm882, 0, %v1006
      %v1009 = vmul.f32 %v1007, %v1007
      %v1010 = vmul.f32 %v1009, -0.001358992
      %v1011 = vadd.f32 %v1010, 0.041655596
      %v1012 = vmul.f32 %v1009, %v1011
      %v1013 = vadd.f32 %v1012, -0.4999988
      %v1014 = vmul.f32 %v1009, %v1013
      %v1015 = vadd.f32 1.0, %v1014
      %v1016 = vmul.f32 %v1007, %v1007
      %v1017 = vmul.f32 %v1016, -0.00019511016
      %v1018 = vadd.f32 %v1017, 0.008332121
      %v1019 = vmul.f32 %v1016, %v1018
      %v1020 = vadd.f32 %v1019, -0.16666654
      %v1021 = vmul.f32 %v1016, %v1020
      %v1022 = vadd.f32 %v1021, 1.0
      %v1023 = vmul.f32 %v1022, %v1007
      %vm1024 = vweird.f32 %v546
      %v1025 = vadd.s32 %v1008, 3
      %v1026 = vand.u32 %v1025, 3
      %vm1027 = vcmp.lt.s32.totalorder %v1026, 2
      %vm1028 = vcmp.eq.s32.totalorder %v1026, 0
      %v1029 = vxor.u32 %v1023, 2147483648
      %v1030 = vsel %vm1028, %v1015, %v1029
      %vm1031 = vcmp.eq.s32.totalorder %v1026, 2
      %v1032 = vxor.u32 %v1015, 2147483648
      %v1033 = vsel %vm1031, %v1032, %v1023
      %v1034 = vsel %vm1027, %v1030, %v1033
      %v1035 = vsel %vm1024, nan, %v1034
      %v1036 = vand.u32 2147483647, %v569
      %vm1037 = vcmp.le.f32.partialorder %v1036, 0.7853982
      %vm1038 = vcmp.lt.s32.totalorder %v569, 0
      %v1039 = vand.u32 %v569, 2139095040
      %v1040 = vshrl.u32 %v1039, 23
      %v1041 = vsub.s32 %v1040, 127
      %v1042 = vand.u32 2147483647, %v569
      %v1043 = vand.u32 %v1042, 8388607
      %v1044 = vor.u32 %v1043, 8388608
      %v1045 = vsub.s32 0, %v1044
      %v1046 = vadd.s32 %v1041, 1
      %vm1047 = vcmp.gt.s32.totalorder %v1046, 0
      %v1048 = vsel %vm1047, %v1046, 0
      %v1049 = vshrl.u32 %v1048, 5
      %v1050 = vand.u32 %v1048, 31
      %v1051 = vsub.s32 32, %v1050
      %v1052 = vshrl.u32 683565275, %v1051
      %v1053 = vshll.u32 683565275, %v1050
      %v1054 = vshrl.u32 2475754826, %v1051
      %v1055 = vor.u32 %v1053, %v1054
      %v1056 = vshll.u32 2475754826, %v1050
      %v1057 = vshrl.u32 2131351028, %v1051
      %v1058 = vor.u32 %v1056, %v1057
      %v1059 = vshll.u32 2131351028, %v1050
      %v1060 = vshrl.u32 2102212464, %v1051
      %v1061 = vor.u32 %v1059, %v1060
      %v1062 = vshll.u32 2102212464, %v1050
      %v1063 = vshrl.u32 920167782, %v1051
      %v1064 = vor.u32 %v1062, %v1063
      %v1065 = vshll.u32 920167782, %v1050
      %v1066 = vshrl.u32 1326507024, %v1051
      %v1067 = vor.u32 %v1065, %v1066
      %vm1068 = vcmp.lt.s32.totalorder %v1049, 1
      %vm1069 = vcmp.lt.s32.totalorder %v1049, 2
      %vm1070 = vcmp.lt.s32.totalorder %v1049, 3
      %vm1071 = vcmp.lt.s32.totalorder %v1049, 4
      %v1072 = vsel %vm1068, %v1052, %v1055
      %v1073 = vsel %vm1071, %v1061, 2102212464
      %v1074 = vsel %vm1070, %v1058, %v1073
      %v1075 = vsel %vm1069, %v1072, %v1074
      %v1076 = vsel %vm1068, %v1055, %v1058
      %v1077 = vsel %vm1071, %v1064, 920167782
      %v1078 = vsel %vm1070, %v1061, %v1077
      %v1079 = vsel %vm1069, %v1076, %v1078
      %v1080 = vsel %vm1068, %v1058, %v1061
      %v1081 = vsel %vm1071, %v1067, 1326507024
      %v1082 = vsel %vm1070, %v1064, %v1081
      %v1083 = vsel %vm1069, %v1080, %v1082
      %v1084 = vshll.u32 %v1044, 8
      %v1085 = vand.u32 %v1084, 65535
      %v1086 = vshrl.u32 %v1084, 16
      %v1087 = vand.u32 %v1083, 65535
      %v1088 = vshrl.u32 %v1083, 16
      %v1089 = vmul.u32 %v1085, %v1087
      %v1090 = vmul.u32 %v1085, %v1088
      %v1091 = vmul.u32 %v1086, %v1087
      %v1092 = vmul.u32 %v1086, %v1088
      %v1093 = vshll.u32 %v1090, 16
      %v1094 = vshrl.u32 %v1090, 16
      %v1095 = vshll.u32 %v1091, 16
      %v1096 = vshrl.u32 %v1091, 16
      %vm1097 = vc.u32 %v1089, %v1093
      %v1098 = vsel %vm1097, 1, 0
      %v1099 = vadd.s32 %v1089, %v1093
      %v1100 = vadd.s32 %v1092, %v1098
      %vm1101 = vc.u32 %v1099, %v1095
      %v1102 = vsel %vm1101, 1, 0
      %v1103 = vadd.s32 %v1099, %v1095
      %v1104 = vadd.s32 %v1100, %v1102
      %v1105 = vadd.s32 %v1104, %v1094
      %v1106 = vadd.s32 %v1105, %v1096
      %v1107 = vand.u32 %v1084, 65535
      %v1108 = vshrl.u32 %v1084, 16
      %v1109 = vand.u32 %v1079, 65535
      %v1110 = vshrl.u32 %v1079, 16
      %v1111 = vmul.u32 %v1107, %v1109
      %v1112 = vmul.u32 %v1107, %v1110
      %v1113 = vmul.u32 %v1108, %v1109
      %v1114 = vmul.u32 %v1108, %v1110
      %v1115 = vshll.u32 %v1112, 16
      %v1116 = vshrl.u32 %v1112, 16
      %v1117 = vshll.u32 %v1113, 16
      %v1118 = vshrl.u32 %v1113, 16
      %vm1119 = vc.u32 %v1111, %v1115
      %v1120 = vsel %vm1119, 1, 0
      %v1121 = vadd.s32 %v1111, %v1115
      %v1122 = vadd.s32 %v1114, %v1120
      %vm1123 = vc.u32 %v1121, %v1117
      %v1124 = vsel %vm1123, 1, 0
      %v1125 = vadd.s32 %v1121, %v1117
      %v1126 = vadd.s32 %v1122, %v1124
      %v1127 = vadd.s32 %v1126, %v1116
      %v1128 = vadd.s32 %v1127, %v1118
      %v1129 = vmul.u32 %v1084, %v1075
      %v1130 = vadd.s32 %v1106, %v1125
      %vm1131 = vc.u32 %v1106, %v1125
      %v1132 = vadd.s32 %v1128, 1
      %v1133 = vsel %vm1131, %v1132, %v1128
      %v1134 = vadd.s32 %v1129, %v1133
      %v1135 = vadd.s32 %v1134, 536870912
      %v1136 = vshrl.u32 %v1135, 30
      %v1137 = vshll.u32 %v1136, 30
      %v1138 = vsub.s32 %v1134, %v1137
      %vm1139 = vcmp.lt.s32.totalorder %v1138, 0
      %v1140 = vsub.s32 0, %v1138
      %v1141 = vsel %vm1139, %v1140, %v1138
      %v1142 = vclz %v1141
      %v1143 = vsub.s32 %v1142, 2
      %vm1144 = vcmp.gt.s32.totalorder 0, %v1143
      %v1145 = vsel %vm1144, 0, %v1143
      %v1146 = vsub.s32 32, %v1145
      %v1147 = vshll.u32 %v1138, %v1145
      %v1148 = vshrl.u32 %v1130, %v1146
      %v1149 = vor.u32 %v1147, %v1148
      %v1150 = vsub.s32 4294967266, %v1145
      %v1151 = vadd.s32 %v1150, 127
      %v1152 = vshll.u32 %v1151, 23
      %v1153 = vor.u32 4788187, %v1152
      %v1154 = vand.u32 2147483647, %v1153
      %v1156 = vcvt.s32.f32 %v1149
      %v1157 = vmul.f32 %v1156, %v1154
      %v1158 = vxor.u32 %v1157, 2147483648
      %v1159 = vsel %vm1038, %v1158, %v1157
      %v1160 = vsub.s32 4, %v1136
      %v1161 = vsel %vm1038, %v1160, %v1136
      %v1162 = vsel %vm1037, %v569, %v1159
      %v1163 = vsel %vm1037, 0, %v1161
      %v1164 = vmul.f32 %v1162, %v1162
      %v1165 = vmul.f32 %v1164, -0.001358992
      %v1166 = vadd.f32 %v1165, 0.041655596
      %v1167 = vmul.f32 %v1164, %v1166
      %v1168 = vadd.f32 %v1167, -0.4999988
      %v1169 = vmul.f32 %v1164, %v1168
      %v1170 = vadd.f32 1.0, %v1169
      %v1171 = vmul.f32 %v1162, %v1162
      %v1172 = vmul.f32 %v1171, -0.00019511016
      %v1173 = vadd.f32 %v1172, 0.008332121
      %v1174 = vmul.f32 %v1171, %v1173
      %v1175 = vadd.f32 %v1174, -0.16666654
      %v1176 = vmul.f32 %v1171, %v1175
      %v1177 = vadd.f32 %v1176, 1.0
      %v1178 = vmul.f32 %v1177, %v1162
      %vm1179 = vweird.f32 %v569
      %v1180 = vadd.s32 %v1163, 3
      %v1181 = vand.u32 %v1180, 3
      %vm1182 = vcmp.lt.s32.totalorder %v1181, 2
      %vm1183 = vcmp.eq.s32.totalorder %v1181, 0
      %v1184 = vxor.u32 %v1178, 2147483648
      %v1185 = vsel %vm1183, %v1170, %v1184
      %vm1186 = vcmp.eq.s32.totalorder %v1181, 2
      %v1187 = vxor.u32 %v1170, 2147483648
      %v1188 = vsel %vm1186, %v1187, %v1178
      %v1189 = vsel %vm1182, %v1185, %v1188
      %v1190 = vsel %vm1179, nan, %v1189
      %v1191 = vmul.f32 %v543, %v1035
      %v1192 = vmul.f32 %v566, %v1190
      %1193 = vst [vmem:[%s271] sm:$0xff] %v879
      %1194 = vst [vmem:[%s271 + $0x8] sm:$0xff] %v880
      %1195 = vst [vmem:[%s271 + $0x10] sm:$0xff] %v1191
      %1196 = vst [vmem:[%s271 + $0x18] sm:$0xff] %v1192
      %p1197 = scmp.lt.s32.totalorder %s17, 1
      %s1198 = scalar_select %p1197, %s17, 1
      %s1199 = smul.addr %s1198, 4
      %s1200 = smul.addr %s1199, 8
      %s1201 = scalar_lea.vmem %s6, %s1200
      // Predicated region
      $region45: #{freblock_forward.3} parent=43 // pred_check
        %p1202 = pneg %p171
      $region46: #{freblock_forward.3} parent=43 // pred_check_branch
        %1204 = sbr.rel (%p1202) target = $region48
      $region47: #{freblock_forward.3} parent=43 // pred_region
        _
      $region48: #{freblock_forward.3} parent=43 // pred_fallthru
        _
    $region44: #{freblock_forward.3} parent=5 // pred_fallthru
      _
    %p1205 = scmp.le.s32.totalorder 2, %s12
    // Predicated region
    $region49: #{freblock_forward.3} parent=5 // pred_check
      %p1206 = pneg %p1205
    $region50: #{freblock_forward.3} parent=5 // pred_check_branch
      %1208 = sbr.rel (%p1206) target = $region52
    $region51: #{freblock_forward.3} parent=5 // pred_region
      %s1209 = ssub.s32 %s12, 2
      // Predicated region
      $region53: #{freblock_forward.3} parent=51 // pred_check
        %p1210 = pneg %p177
      $region54: #{freblock_forward.3} parent=51 // pred_check_branch
        %1212 = sbr.rel (%p1210) target = $region56
      $region55: #{freblock_forward.3} parent=51 // pred_region
        %p1213 = scmp.lt.s32.totalorder %s18, 1
        %s1214 = scalar_select %p1213, %s18, 1
        %s1215 = smul.addr %s1214, 4
        %s1216 = smul.addr %s1215, 8
        %s1217 = scalar_lea.vmem %s6, %s1216
      $region56: #{freblock_forward.3} parent=51 // pred_fallthru
        _
    $region52: #{freblock_forward.3} parent=5 // pred_fallthru
      _
  $region6: #{freblock_forward.3} parent=0 // loop_footer
    %s16 = sadd.s32 1, %s12
  $region7: #{freblock_forward.3} parent=0 // loop_footer_branch
    %11 = sbr.rel target = $region3
  $region8: #{freblock_forward.3} parent=0 // loop_exit
    _

// kernel: reverse.0
$region0: #{reverse.0}
  %s0 = inlined_call_operand.vmem [shape: f32[2,8,16,7], index: 0, kind: input, shape index: {}]
  %s1 = inlined_call_operand.vmem [shape: f32[2,8,16,7], index: 1, kind: output, shape index: {}]
  $region1: #{reverse.0} parent=0
    #allocation0 [shape = 'u8[131072]{0}', space=vmem, size = 0x20000, scoped, tag = 'operand span for operand 0']
    #allocation1 [shape = 'u8[65536]{0}', space=vmem, size = 0x10000, scoped, tag = 'operand span for operand 1']
    %s2 = scalar_lea.vmem [#allocation0], 8
    // Predicated region
    $region2: #{reverse.0} parent=1 // pred_check
      _
    $region3: #{reverse.0} parent=1 // pred_check_branch
      %4 = sbr.rel (0) target = $region5
    $region4: #{reverse.0} parent=1 // pred_region
      // Predicated region
      $region6: #{reverse.0} parent=4 // pred_check
        _
      $region7: #{reverse.0} parent=4 // pred_check_branch
        %6 = sbr.rel (0) target = $region9
      $region8: #{reverse.0} parent=4 // pred_region
        // Predicated region
        $region21: #{reverse.0} parent=8 // pred_check
          _
        $region22: #{reverse.0} parent=8 // pred_check_branch
          %52 = sbr.rel (0) target = $region24
        $region23: #{reverse.0} parent=8 // pred_region
          loop: start=0, step=1, limit=1
          $region25: #{reverse.0} parent=23 // loop_pre_header
            _
          $region26: #{reverse.0} parent=23 // loop_header
            %s54 = sphi 0, %s58
            %p55 = scmp.ge.s32.totalorder %s54, 1
            %s59 = sphi %s0, %s0
            %s60 = sphi %s2, %s2
          $region27: #{reverse.0} parent=23 // loop_header_branch
            %57 = sbr.rel (%p55) target = $region31
          $region28: #{reverse.0} parent=23 // loop_body
            %v61 = vld [vmem:[%s59] sm:$0xff]
            %62 = vst [vmem:[%s60] sm:$0xff] %v61
            %v63 = vld [vmem:[%s59 + $0x8] sm:$0xff]
            %64 = vst [vmem:[%s60 + $0x10] sm:$0xff] %v63
            %v65 = vld [vmem:[%s59 + $0x10] sm:$0xff]
            %66 = vst [vmem:[%s60 + $0x20] sm:$0xff] %v65
            %v67 = vld [vmem:[%s59 + $0x18] sm:$0xff]
            %68 = vst [vmem:[%s60 + $0x30] sm:$0xff] %v67
            %v69 = vld [vmem:[%s59 + $0x20] sm:$0xff]
            %70 = vst [vmem:[%s60 + $0x40] sm:$0xff] %v69
            %v71 = vld [vmem:[%s59 + $0x28] sm:$0xff]
            %72 = vst [vmem:[%s60 + $0x50] sm:$0xff] %v71
            %v73 = vld [vmem:[%s59 + $0x30] sm:$0xff]
            %74 = vst [vmem:[%s60 + $0x60] sm:$0xff] %v73
            %v75 = vld [vmem:[%s59 + $0x38] sm:$0xff]
            %76 = vst [vmem:[%s60 + $0x70] sm:$0xff] %v75
            %v77 = vld [vmem:[%s59 + $0x40] sm:$0xff]
            %78 = vst [vmem:[%s60 + $0x80] sm:$0xff] %v77
            %v79 = vld [vmem:[%s59 + $0x48] sm:$0xff]
            %80 = vst [vmem:[%s60 + $0x90] sm:$0xff] %v79
            %v81 = vld [vmem:[%s59 + $0x50] sm:$0xff]
            %82 = vst [vmem:[%s60 + $0xa0] sm:$0xff] %v81
            %v83 = vld [vmem:[%s59 + $0x58] sm:$0xff]
            %84 = vst [vmem:[%s60 + $0xb0] sm:$0xff] %v83
            %v85 = vld [vmem:[%s59 + $0x60] sm:$0xff]
            %86 = vst [vmem:[%s60 + $0xc0] sm:$0xff] %v85
            %v87 = vld [vmem:[%s59 + $0x68] sm:$0xff]
            %88 = vst [vmem:[%s60 + $0xd0] sm:$0xff] %v87
            %v89 = vld [vmem:[%s59 + $0x70] sm:$0xff]
            %90 = vst [vmem:[%s60 + $0xe0] sm:$0xff] %v89
            %v91 = vld [vmem:[%s59 + $0x78] sm:$0xff]
            %92 = vst [vmem:[%s60 + $0xf0] sm:$0xff] %v91
          $region29: #{reverse.0} parent=23 // loop_footer
            %s58 = sadd.s32 1, %s54
          $region30: #{reverse.0} parent=23 // loop_footer_branch
            %53 = sbr.rel target = $region26
          $region31: #{reverse.0} parent=23 // loop_exit
            _
        $region24: #{reverse.0} parent=8 // pred_fallthru
          _
        // Predicated region
        $region32: #{reverse.0} parent=8 // pred_check
          _
        $region33: #{reverse.0} parent=8 // pred_check_branch
          %94 = sbr.rel target = $region35
        $region34: #{reverse.0} parent=8 // pred_region
          _
        $region35: #{reverse.0} parent=8 // pred_fallthru
          _
      $region9: #{reverse.0} parent=4 // pred_fallthru
        _
      // Predicated region
      $region10: #{reverse.0} parent=4 // pred_check
        _
      $region11: #{reverse.0} parent=4 // pred_check_branch
        %8 = sbr.rel target = $region13
      $region12: #{reverse.0} parent=4 // pred_region
        %s10 = ssub.s32 256, 1
        loop: start=0, step=1, limit=1
        $region14: #{reverse.0} parent=12 // loop_pre_header
          _
        $region15: #{reverse.0} parent=12 // loop_header
          %s12 = sphi 0, %s16
          %p13 = scmp.ge.s32.totalorder %s12, 1
          %s17 = sphi %s0, %s0
          %s18 = sphi %s2, %s2
        $region16: #{reverse.0} parent=12 // loop_header_branch
          %15 = sbr.rel (%p13) target = $region20
        $region17: #{reverse.0} parent=12 // loop_body
          %v19 = vld [vmem:[%s17] sm:%s10]
          %20 = vst [vmem:[%s18] sm:%s10] %v19
          %v21 = vld [vmem:[%s17 + $0x8] sm:%s10]
          %22 = vst [vmem:[%s18 + $0x10] sm:%s10] %v21
          %v23 = vld [vmem:[%s17 + $0x10] sm:%s10]
          %24 = vst [vmem:[%s18 + $0x20] sm:%s10] %v23
          %v25 = vld [vmem:[%s17 + $0x18] sm:%s10]
          %26 = vst [vmem:[%s18 + $0x30] sm:%s10] %v25
          %v27 = vld [vmem:[%s17 + $0x20] sm:%s10]
          %28 = vst [vmem:[%s18 + $0x40] sm:%s10] %v27
          %v29 = vld [vmem:[%s17 + $0x28] sm:%s10]
          %30 = vst [vmem:[%s18 + $0x50] sm:%s10] %v29
          %v31 = vld [vmem:[%s17 + $0x30] sm:%s10]
          %32 = vst [vmem:[%s18 + $0x60] sm:%s10] %v31
          %v33 = vld [vmem:[%s17 + $0x38] sm:%s10]
          %34 = vst [vmem:[%s18 + $0x70] sm:%s10] %v33
          %v35 = vld [vmem:[%s17 + $0x40] sm:%s10]
          %36 = vst [vmem:[%s18 + $0x80] sm:%s10] %v35
          %v37 = vld [vmem:[%s17 + $0x48] sm:%s10]
          %38 = vst [vmem:[%s18 + $0x90] sm:%s10] %v37
          %v39 = vld [vmem:[%s17 + $0x50] sm:%s10]
          %40 = vst [vmem:[%s18 + $0xa0] sm:%s10] %v39
          %v41 = vld [vmem:[%s17 + $0x58] sm:%s10]
          %42 = vst [vmem:[%s18 + $0xb0] sm:%s10] %v41
          %v43 = vld [vmem:[%s17 + $0x60] sm:%s10]
          %44 = vst [vmem:[%s18 + $0xc0] sm:%s10] %v43
          %v45 = vld [vmem:[%s17 + $0x68] sm:%s10]
          %46 = vst [vmem:[%s18 + $0xd0] sm:%s10] %v45
          %v47 = vld [vmem:[%s17 + $0x70] sm:%s10]
          %48 = vst [vmem:[%s18 + $0xe0] sm:%s10] %v47
          %v49 = vld [vmem:[%s17 + $0x78] sm:%s10]
          %50 = vst [vmem:[%s18 + $0xf0] sm:%s10] %v49
        $region18: #{reverse.0} parent=12 // loop_footer
          %s16 = sadd.s32 1, %s12
        $region19: #{reverse.0} parent=12 // loop_footer_branch
          %11 = sbr.rel target = $region15
        $region20: #{reverse.0} parent=12 // loop_exit
          _
      $region13: #{reverse.0} parent=4 // pred_fallthru
        _
    $region5: #{reverse.0} parent=1 // pred_fallthru
      _
    %95 = vnop
    %s96 = scalar_lea.vmem [#allocation0], 7
    %v97 = vld [vmem:[%s96] ss:$-1 sm:$0xff]
    %v98 = vrot.slane %v97, 1
    %99 = vst [vmem:[#allocation1] sm:$0xff] %v98
    %s100 = scalar_lea.vmem [#allocation0], 8
    %s101 = scalar_lea.vmem %s100, 7 [#allocation0]
    %v102 = vld [vmem:[%s101] ss:$-1 sm:$0xff]
    %v103 = vrot.slane %v102, 1
    %v104 = vlaneseq
    %v105 = vshrl.u32 %v104, 7
    %vm106 = vcmp.lt.s32.totalorder %v105, 7
    %107 = vst.msk [vmem:[#allocation1] sm:$0xff] %vm106, %v103
    %s108 = scalar_lea.vmem [#allocation1], 8
    %s109 = scalar_lea.vmem [#allocation0], 16
    %s110 = scalar_lea.vmem %s109, 7 [#allocation0]
    %v111 = vld [vmem:[%s110] ss:$-1 sm:$0xff]
    %v112 = vrot.slane %v111, 1
    %113 = vst [vmem:[%s108] sm:$0xff] %v112
    %s114 = scalar_lea.vmem %s109, 8 [#allocation0]
    %s115 = scalar_lea.vmem %s114, 7 [#allocation0]
    %v116 = vld [vmem:[%s115] ss:$-1 sm:$0xff]
    %v117 = vrot.slane %v116, 1
    %v118 = vlaneseq
    %v119 = vshrl.u32 %v118, 7
    %vm120 = vcmp.lt.s32.totalorder %v119, 7
    %121 = vst.msk [vmem:[%s108] sm:$0xff] %vm120, %v117
    %s122 = scalar_lea.vmem [#allocation1], 16
    %s123 = scalar_lea.vmem [#allocation0], 32
    %s124 = scalar_lea.vmem %s123, 7 [#allocation0]
    %v125 = vld [vmem:[%s124] ss:$-1 sm:$0xff]
    %v126 = vrot.slane %v125, 1
    %127 = vst [vmem:[%s122] sm:$0xff] %v126
    %s128 = scalar_lea.vmem %s123, 8 [#allocation0]
    %s129 = scalar_lea.vmem %s128, 7 [#allocation0]
    %v130 = vld [vmem:[%s129] ss:$-1 sm:$0xff]
    %v131 = vrot.slane %v130, 1
    %v132 = vlaneseq
    %v133 = vshrl.u32 %v132, 7
    %vm134 = vcmp.lt.s32.totalorder %v133, 7
    %135 = vst.msk [vmem:[%s122] sm:$0xff] %vm134, %v131
    %s136 = scalar_lea.vmem [#allocation1], 24
    %s137 = scalar_lea.vmem [#allocation0], 48
    %s138 = scalar_lea.vmem %s137, 7 [#allocation0]
    %v139 = vld [vmem:[%s138] ss:$-1 sm:$0xff]
    %v140 = vrot.slane %v139, 1
    %141 = vst [vmem:[%s136] sm:$0xff] %v140
    %s142 = scalar_lea.vmem %s137, 8 [#allocation0]
    %s143 = scalar_lea.vmem %s142, 7 [#allocation0]
    %v144 = vld [vmem:[%s143] ss:$-1 sm:$0xff]
    %v145 = vrot.slane %v144, 1
    %v146 = vlaneseq
    %v147 = vshrl.u32 %v146, 7
    %vm148 = vcmp.lt.s32.totalorder %v147, 7
    %149 = vst.msk [vmem:[%s136] sm:$0xff] %vm148, %v145
    %s150 = scalar_lea.vmem [#allocation1], 32
    %s151 = scalar_lea.vmem [#allocation0], 64
    %s152 = scalar_lea.vmem %s151, 7 [#allocation0]
    %v153 = vld [vmem:[%s152] ss:$-1 sm:$0xff]
    %v154 = vrot.slane %v153, 1
    %155 = vst [vmem:[%s150] sm:$0xff] %v154
    %s156 = scalar_lea.vmem %s151, 8 [#allocation0]
    %s157 = scalar_lea.vmem %s156, 7 [#allocation0]
    %v158 = vld [vmem:[%s157] ss:$-1 sm:$0xff]
    %v159 = vrot.slane %v158, 1
    %v160 = vlaneseq
    %v161 = vshrl.u32 %v160, 7
    %vm162 = vcmp.lt.s32.totalorder %v161, 7
    %163 = vst.msk [vmem:[%s150] sm:$0xff] %vm162, %v159
    %s164 = scalar_lea.vmem [#allocation1], 40
    %s165 = scalar_lea.vmem [#allocation0], 80
    %s166 = scalar_lea.vmem %s165, 7 [#allocation0]
    %v167 = vld [vmem:[%s166] ss:$-1 sm:$0xff]
    %v168 = vrot.slane %v167, 1
    %169 = vst [vmem:[%s164] sm:$0xff] %v168
    %s170 = scalar_lea.vmem %s165, 8 [#allocation0]
    %s171 = scalar_lea.vmem %s170, 7 [#allocation0]
    %v172 = vld [vmem:[%s171] ss:$-1 sm:$0xff]
    %v173 = vrot.slane %v172, 1
    %v174 = vlaneseq
    %v175 = vshrl.u32 %v174, 7
    %vm176 = vcmp.lt.s32.totalorder %v175, 7
    %177 = vst.msk [vmem:[%s164] sm:$0xff] %vm176, %v173
    %s178 = scalar_lea.vmem [#allocation1], 48
    %s179 = scalar_lea.vmem [#allocation0], 96
    %s180 = scalar_lea.vmem %s179, 7 [#allocation0]
    %v181 = vld [vmem:[%s180] ss:$-1 sm:$0xff]
    %v182 = vrot.slane %v181, 1
    %183 = vst [vmem:[%s178] sm:$0xff] %v182
    %s184 = scalar_lea.vmem %s179, 8 [#allocation0]
    %s185 = scalar_lea.vmem %s184, 7 [#allocation0]
    %v186 = vld [vmem:[%s185] ss:$-1 sm:$0xff]
    %v187 = vrot.slane %v186, 1
    %v188 = vlaneseq
    %v189 = vshrl.u32 %v188, 7
    %vm190 = vcmp.lt.s32.totalorder %v189, 7
    %191 = vst.msk [vmem:[%s178] sm:$0xff] %vm190, %v187
    %s192 = scalar_lea.vmem [#allocation1], 56
    %s193 = scalar_lea.vmem [#allocation0], 112
    %s194 = scalar_lea.vmem %s193, 7 [#allocation0]
    %v195 = vld [vmem:[%s194] ss:$-1 sm:$0xff]
    %v196 = vrot.slane %v195, 1
    %197 = vst [vmem:[%s192] sm:$0xff] %v196
    %s198 = scalar_lea.vmem %s193, 8 [#allocation0]
    %s199 = scalar_lea.vmem %s198, 7 [#allocation0]
    %v200 = vld [vmem:[%s199] ss:$-1 sm:$0xff]
    %v201 = vrot.slane %v200, 1
    %v202 = vlaneseq
    %v203 = vshrl.u32 %v202, 7
    %vm204 = vcmp.lt.s32.totalorder %v203, 7
    %205 = vst.msk [vmem:[%s192] sm:$0xff] %vm204, %v201
    %s206 = scalar_lea.vmem [#allocation1], 64
    %s207 = scalar_lea.vmem [#allocation0], 128
    %s208 = scalar_lea.vmem %s207, 7 [#allocation0]
    %v209 = vld [vmem:[%s208] ss:$-1 sm:$0xff]
    %v210 = vrot.slane %v209, 1
    %211 = vst [vmem:[%s206] sm:$0xff] %v210
    %s212 = scalar_lea.vmem %s207, 8 [#allocation0]
    %s213 = scalar_lea.vmem %s212, 7 [#allocation0]
    %v214 = vld [vmem:[%s213] ss:$-1 sm:$0xff]
    %v215 = vrot.slane %v214, 1
    %v216 = vlaneseq
    %v217 = vshrl.u32 %v216, 7
    %vm218 = vcmp.lt.s32.totalorder %v217, 7
    %219 = vst.msk [vmem:[%s206] sm:$0xff] %vm218, %v215
    %s220 = scalar_lea.vmem [#allocation1], 72
    %s221 = scalar_lea.vmem [#allocation0], 144
    %s222 = scalar_lea.vmem %s221, 7 [#allocation0]
    %v223 = vld [vmem:[%s222] ss:$-1 sm:$0xff]
    %v224 = vrot.slane %v223, 1
    %225 = vst [vmem:[%s220] sm:$0xff] %v224
    %s226 = scalar_lea.vmem %s221, 8 [#allocation0]
    %s227 = scalar_lea.vmem %s226, 7 [#allocation0]
    %v228 = vld [vmem:[%s227] ss:$-1 sm:$0xff]
    %v229 = vrot.slane %v228, 1
    %v230 = vlaneseq
    %v231 = vshrl.u32 %v230, 7
    %vm232 = vcmp.lt.s32.totalorder %v231, 7
    %233 = vst.msk [vmem:[%s220] sm:$0xff] %vm232, %v229
    %s234 = scalar_lea.vmem [#allocation1], 80
    %s235 = scalar_lea.vmem [#allocation0], 160
    %s236 = scalar_lea.vmem %s235, 7 [#allocation0]
    %v237 = vld [vmem:[%s236] ss:$-1 sm:$0xff]
    %v238 = vrot.slane %v237, 1
    %239 = vst [vmem:[%s234] sm:$0xff] %v238
    %s240 = scalar_lea.vmem %s235, 8 [#allocation0]
    %s241 = scalar_lea.vmem %s240, 7 [#allocation0]
    %v242 = vld [vmem:[%s241] ss:$-1 sm:$0xff]
    %v243 = vrot.slane %v242, 1
    %v244 = vlaneseq
    %v245 = vshrl.u32 %v244, 7
    %vm246 = vcmp.lt.s32.totalorder %v245, 7
    %247 = vst.msk [vmem:[%s234] sm:$0xff] %vm246, %v243
    %s248 = scalar_lea.vmem [#allocation1], 88
    %s249 = scalar_lea.vmem [#allocation0], 176
    %s250 = scalar_lea.vmem %s249, 7 [#allocation0]
    %v251 = vld [vmem:[%s250] ss:$-1 sm:$0xff]
    %v252 = vrot.slane %v251, 1
    %253 = vst [vmem:[%s248] sm:$0xff] %v252
    %s254 = scalar_lea.vmem %s249, 8 [#allocation0]
    %s255 = scalar_lea.vmem %s254, 7 [#allocation0]
    %v256 = vld [vmem:[%s255] ss:$-1 sm:$0xff]
    %v257 = vrot.slane %v256, 1
    %v258 = vlaneseq
    %v259 = vshrl.u32 %v258, 7
    %vm260 = vcmp.lt.s32.totalorder %v259, 7
    %261 = vst.msk [vmem:[%s248] sm:$0xff] %vm260, %v257
    %s262 = scalar_lea.vmem [#allocation1], 96
    %s263 = scalar_lea.vmem [#allocation0], 192
    %s264 = scalar_lea.vmem %s263, 7 [#allocation0]
    %v265 = vld [vmem:[%s264] ss:$-1 sm:$0xff]
    %v266 = vrot.slane %v265, 1
    %267 = vst [vmem:[%s262] sm:$0xff] %v266
    %s268 = scalar_lea.vmem %s263, 8 [#allocation0]
    %s269 = scalar_lea.vmem %s268, 7 [#allocation0]
    %v270 = vld [vmem:[%s269] ss:$-1 sm:$0xff]
    %v271 = vrot.slane %v270, 1
    %v272 = vlaneseq
    %v273 = vshrl.u32 %v272, 7
    %vm274 = vcmp.lt.s32.totalorder %v273, 7
    %275 = vst.msk [vmem:[%s262] sm:$0xff] %vm274, %v271
    %s276 = scalar_lea.vmem [#allocation1], 104
    %s277 = scalar_lea.vmem [#allocation0], 208
    %s278 = scalar_lea.vmem %s277, 7 [#allocation0]
    %v279 = vld [vmem:[%s278] ss:$-1 sm:$0xff]
    %v280 = vrot.slane %v279, 1
    %281 = vst [vmem:[%s276] sm:$0xff] %v280
    %s282 = scalar_lea.vmem %s277, 8 [#allocation0]
    %s283 = scalar_lea.vmem %s282, 7 [#allocation0]
    %v284 = vld [vmem:[%s283] ss:$-1 sm:$0xff]
    %v285 = vrot.slane %v284, 1
    %v286 = vlaneseq
    %v287 = vshrl.u32 %v286, 7
    %vm288 = vcmp.lt.s32.totalorder %v287, 7
    %289 = vst.msk [vmem:[%s276] sm:$0xff] %vm288, %v285
    %s290 = scalar_lea.vmem [#allocation1], 112
    %s291 = scalar_lea.vmem [#allocation0], 224
    %s292 = scalar_lea.vmem %s291, 7 [#allocation0]
    %v293 = vld [vmem:[%s292] ss:$-1 sm:$0xff]
    %v294 = vrot.slane %v293, 1
    %295 = vst [vmem:[%s290] sm:$0xff] %v294
    %s296 = scalar_lea.vmem %s291, 8 [#allocation0]
    %s297 = scalar_lea.vmem %s296, 7 [#allocation0]
    %v298 = vld [vmem:[%s297] ss:$-1 sm:$0xff]
    %v299 = vrot.slane %v298, 1
    %v300 = vlaneseq
    %v301 = vshrl.u32 %v300, 7
    %vm302 = vcmp.lt.s32.totalorder %v301, 7
    %303 = vst.msk [vmem:[%s290] sm:$0xff] %vm302, %v299
    %s304 = scalar_lea.vmem [#allocation1], 120
    %s305 = scalar_lea.vmem [#allocation0], 240
    %s306 = scalar_lea.vmem %s305, 7 [#allocation0]
    %v307 = vld [vmem:[%s306] ss:$-1 sm:$0xff]
    %v308 = vrot.slane %v307, 1
    %309 = vst [vmem:[%s304] sm:$0xff] %v308
    %s310 = scalar_lea.vmem %s305, 8 [#allocation0]
    %s311 = scalar_lea.vmem %s310, 7 [#allocation0]
    %v312 = vld [vmem:[%s311] ss:$-1 sm:$0xff]
    %v313 = vrot.slane %v312, 1
    %v314 = vlaneseq
    %v315 = vshrl.u32 %v314, 7
    %vm316 = vcmp.lt.s32.totalorder %v315, 7
    %317 = vst.msk [vmem:[%s304] sm:$0xff] %vm316, %v313
    // Predicated region
    $region36: #{reverse.0} parent=1 // pred_check
      _
    $region37: #{reverse.0} parent=1 // pred_check_branch
      %319 = sbr.rel (0) target = $region39
    $region38: #{reverse.0} parent=1 // pred_region
      // Predicated region
      $region40: #{reverse.0} parent=38 // pred_check
        _
      $region41: #{reverse.0} parent=38 // pred_check_branch
        %321 = sbr.rel (0) target = $region43
      $region42: #{reverse.0} parent=38 // pred_region
        // Predicated region
        $region55: #{reverse.0} parent=42 // pred_check
          _
        $region56: #{reverse.0} parent=42 // pred_check_branch
          %367 = sbr.rel (0) target = $region58
        $region57: #{reverse.0} parent=42 // pred_region
          loop: start=0, step=1, limit=1
          $region59: #{reverse.0} parent=57 // loop_pre_header
            _
          $region60: #{reverse.0} parent=57 // loop_header
            %s369 = sphi 0, %s373
            %p370 = scmp.ge.s32.totalorder %s369, 1
            %s374 = sphi [#allocation1], [#allocation1]
            %s375 = sphi %s1, %s1
          $region61: #{reverse.0} parent=57 // loop_header_branch
            %372 = sbr.rel (%p370) target = $region65
          $region62: #{reverse.0} parent=57 // loop_body
            %v376 = vld [vmem:[%s374] sm:$0xff]
            %377 = vst [vmem:[%s375] sm:$0xff] %v376
            %v378 = vld [vmem:[%s374 + $0x8] sm:$0xff]
            %379 = vst [vmem:[%s375 + $0x8] sm:$0xff] %v378
            %v380 = vld [vmem:[%s374 + $0x10] sm:$0xff]
            %381 = vst [vmem:[%s375 + $0x10] sm:$0xff] %v380
            %v382 = vld [vmem:[%s374 + $0x18] sm:$0xff]
            %383 = vst [vmem:[%s375 + $0x18] sm:$0xff] %v382
            %v384 = vld [vmem:[%s374 + $0x20] sm:$0xff]
            %385 = vst [vmem:[%s375 + $0x20] sm:$0xff] %v384
            %v386 = vld [vmem:[%s374 + $0x28] sm:$0xff]
            %387 = vst [vmem:[%s375 + $0x28] sm:$0xff] %v386
            %v388 = vld [vmem:[%s374 + $0x30] sm:$0xff]
            %389 = vst [vmem:[%s375 + $0x30] sm:$0xff] %v388
            %v390 = vld [vmem:[%s374 + $0x38] sm:$0xff]
            %391 = vst [vmem:[%s375 + $0x38] sm:$0xff] %v390
            %v392 = vld [vmem:[%s374 + $0x40] sm:$0xff]
            %393 = vst [vmem:[%s375 + $0x40] sm:$0xff] %v392
            %v394 = vld [vmem:[%s374 + $0x48] sm:$0xff]
            %395 = vst [vmem:[%s375 + $0x48] sm:$0xff] %v394
            %v396 = vld [vmem:[%s374 + $0x50] sm:$0xff]
            %397 = vst [vmem:[%s375 + $0x50] sm:$0xff] %v396
            %v398 = vld [vmem:[%s374 + $0x58] sm:$0xff]
            %399 = vst [vmem:[%s375 + $0x58] sm:$0xff] %v398
            %v400 = vld [vmem:[%s374 + $0x60] sm:$0xff]
            %401 = vst [vmem:[%s375 + $0x60] sm:$0xff] %v400
            %v402 = vld [vmem:[%s374 + $0x68] sm:$0xff]
            %403 = vst [vmem:[%s375 + $0x68] sm:$0xff] %v402
            %v404 = vld [vmem:[%s374 + $0x70] sm:$0xff]
            %405 = vst [vmem:[%s375 + $0x70] sm:$0xff] %v404
            %v406 = vld [vmem:[%s374 + $0x78] sm:$0xff]
            %407 = vst [vmem:[%s375 + $0x78] sm:$0xff] %v406
          $region63: #{reverse.0} parent=57 // loop_footer
            %s373 = sadd.s32 1, %s369
          $region64: #{reverse.0} parent=57 // loop_footer_branch
            %368 = sbr.rel target = $region60
          $region65: #{reverse.0} parent=57 // loop_exit
            _
        $region58: #{reverse.0} parent=42 // pred_fallthru
          _
        // Predicated region
        $region66: #{reverse.0} parent=42 // pred_check
          _
        $region67: #{reverse.0} parent=42 // pred_check_branch
          %409 = sbr.rel target = $region69
        $region68: #{reverse.0} parent=42 // pred_region
          _
        $region69: #{reverse.0} parent=42 // pred_fallthru
          _
      $region43: #{reverse.0} parent=38 // pred_fallthru
        _
      // Predicated region
      $region44: #{reverse.0} parent=38 // pred_check
        _
      $region45: #{reverse.0} parent=38 // pred_check_branch
        %323 = sbr.rel target = $region47
      $region46: #{reverse.0} parent=38 // pred_region
        %s325 = ssub.s32 256, 1
        loop: start=0, step=1, limit=1
        $region48: #{reverse.0} parent=46 // loop_pre_header
          _
        $region49: #{reverse.0} parent=46 // loop_header
          %s327 = sphi 0, %s331
          %p328 = scmp.ge.s32.totalorder %s327, 1
          %s332 = sphi [#allocation1], [#allocation1]
          %s333 = sphi %s1, %s1
        $region50: #{reverse.0} parent=46 // loop_header_branch
          %330 = sbr.rel (%p328) target = $region54
        $region51: #{reverse.0} parent=46 // loop_body
          %v334 = vld [vmem:[%s332] sm:%s325]
          %335 = vst [vmem:[%s333] sm:%s325] %v334
          %v336 = vld [vmem:[%s332 + $0x8] sm:%s325]
          %337 = vst [vmem:[%s333 + $0x8] sm:%s325] %v336
          %v338 = vld [vmem:[%s332 + $0x10] sm:%s325]
          %339 = vst [vmem:[%s333 + $0x10] sm:%s325] %v338
          %v340 = vld [vmem:[%s332 + $0x18] sm:%s325]
          %341 = vst [vmem:[%s333 + $0x18] sm:%s325] %v340
          %v342 = vld [vmem:[%s332 + $0x20] sm:%s325]
          %343 = vst [vmem:[%s333 + $0x20] sm:%s325] %v342
          %v344 = vld [vmem:[%s332 + $0x28] sm:%s325]
          %345 = vst [vmem:[%s333 + $0x28] sm:%s325] %v344
          %v346 = vld [vmem:[%s332 + $0x30] sm:%s325]
          %347 = vst [vmem:[%s333 + $0x30] sm:%s325] %v346
          %v348 = vld [vmem:[%s332 + $0x38] sm:%s325]
          %349 = vst [vmem:[%s333 + $0x38] sm:%s325] %v348
          %v350 = vld [vmem:[%s332 + $0x40] sm:%s325]
          %351 = vst [vmem:[%s333 + $0x40] sm:%s325] %v350
          %v352 = vld [vmem:[%s332 + $0x48] sm:%s325]
          %353 = vst [vmem:[%s333 + $0x48] sm:%s325] %v352
          %v354 = vld [vmem:[%s332 + $0x50] sm:%s325]
          %355 = vst [vmem:[%s333 + $0x50] sm:%s325] %v354
          %v356 = vld [vmem:[%s332 + $0x58] sm:%s325]
          %357 = vst [vmem:[%s333 + $0x58] sm:%s325] %v356
          %v358 = vld [vmem:[%s332 + $0x60] sm:%s325]
          %359 = vst [vmem:[%s333 + $0x60] sm:%s325] %v358
          %v360 = vld [vmem:[%s332 + $0x68] sm:%s325]
          %361 = vst [vmem:[%s333 + $0x68] sm:%s325] %v360
          %v362 = vld [vmem:[%s332 + $0x70] sm:%s325]
          %363 = vst [vmem:[%s333 + $0x70] sm:%s325] %v362
          %v364 = vld [vmem:[%s332 + $0x78] sm:%s325]
          %365 = vst [vmem:[%s333 + $0x78] sm:%s325] %v364
        $region52: #{reverse.0} parent=46 // loop_footer
          %s331 = sadd.s32 1, %s327
        $region53: #{reverse.0} parent=46 // loop_footer_branch
          %326 = sbr.rel target = $region49
        $region54: #{reverse.0} parent=46 // loop_exit
          _
      $region47: #{reverse.0} parent=38 // pred_fallthru
        _
    $region39: #{reverse.0} parent=1 // pred_fallthru
      _
    %410 = vnop

</llo_original>
